<compile_context>
chip_gen: v6e
topology: v6e:2x2x1
jax: 0.10.0
libtpu: 0.0.40
codegen_flags: <defaults>
</compile_context>

<pallas_src>
import jax
import jax.numpy as jnp
from jax import lax
from jax.experimental import pallas as pl
from jax.experimental.pallas import tpu as pltpu

LANE = 128


def _gru_scaled_kernel(xw_ref, h0_ref, wih_t_ref, whh_t_ref, vec_ref,
                       y_ref, hn_ref,
                       gx_all, h_all):
    # Static shapes (Hp = gate-padded hidden size, multiple of 128):
    #   xw_ref:    (1, T, I+1)   last column is ones (bias folded into wih_t)
    #   h0_ref:    (1, 1, Hp)
    #   wih_t_ref: (I+1, 3*Hp)   norm + b_ih + b_hh[r,z] folded, gate-padded, transposed
    #   whh_t_ref: (Hp, 3*Hp)    gate-padded, transposed
    #   vec_ref:   (3, Hp)       rows: [b_hn, out_mean, out_std] (padded)
    #   y_ref:     (1, T, Hp)    hn_ref: (1, 1, Hp)
    #   gx_all:    (T, 3*Hp) VMEM scratch,  h_all: (T, Hp) VMEM scratch
    T = xw_ref.shape[1]
    Hp = hn_ref.shape[-1]

    # One MXU call for every timestep's input projection; normalization and the
    # r/z biases ride in via the folded weights and the ones column.
    gx_all[...] = jnp.dot(xw_ref[0], wih_t_ref[...],
                          preferred_element_type=jnp.float32)          # (T, 3*Hp)

    w_hh_t = whh_t_ref[...]                 # (Hp, 3*Hp) -- hoisted
    b_hn = vec_ref[0:1, :]                  # (1, Hp)

    def step(t, h):
        gx = gx_all[pl.ds(t, 1), :]                                     # (1, 3*Hp)
        gh = jnp.dot(h.astype(w_hh_t.dtype), w_hh_t,
                     preferred_element_type=jnp.float32)                # (1, 3*Hp)

        # Lane-aligned gate selects (offsets 0, Hp, 2*Hp are 128-multiples).
        r = jax.nn.sigmoid(gx[:, 0 * Hp:1 * Hp] + gh[:, 0 * Hp:1 * Hp])
        z = jax.nn.sigmoid(gx[:, 1 * Hp:2 * Hp] + gh[:, 1 * Hp:2 * Hp])
        n = jnp.tanh(gx[:, 2 * Hp:3 * Hp] + r * (gh[:, 2 * Hp:3 * Hp] + b_hn))
        h_new = (1.0 - z) * n + z * h

        h_all[pl.ds(t, 1), :] = h_new
        return h_new

    h = lax.fori_loop(0, T, step, h0_ref[0].astype(jnp.float32), unroll=True)

    # Single fused denormalization + lane-dense (T, Hp) slab store.
    out_mean = vec_ref[1:2, :]
    out_std = vec_ref[2:3, :]
    y_ref[0] = (h_all[...] * out_std + out_mean).astype(y_ref.dtype)
    hn_ref[0] = h.astype(hn_ref.dtype)      # final hidden state (L=1, B=1, Hp)


def scaled_gru_forward(x, h0, w_ih, w_hh, b_ih, b_hh,
                       input_mean, input_std, output_mean, output_std,
                       param_dtype=jnp.float32):
    """param_dtype=jnp.bfloat16 enables native-MXU weights/activations on
    v6e/v7x (accumulation and gate math stay f32); keep f32 on v5e."""
    B, T, I = x.shape
    L, Bh, H = h0.shape
    assert B == 1 and Bh == 1 and L == 1, "wrapper h0 buffer implies L=1, B=1"

    Hp = ((H + LANE - 1) // LANE) * LANE    # gate-aligned padded hidden size

    # ---- trace-time folding (f32, zero in-kernel cost) ----------------------
    inv_std = 1.0 / input_std                                # (I,)
    # gx = ((x - mean) * inv_std) @ w_ih.T + b_ih
    #    = x @ (w_ih * inv_std).T + (b_ih - w_ih @ (mean * inv_std))
    w_ih_fold = w_ih * inv_std[None, :]                      # (3H, I)
    b_gx = b_ih - w_ih @ (input_mean * inv_std)              # (3H,)
    b_gx = b_gx.at[:2 * H].add(b_hh[:2 * H])                 # fold r/z hidden biases
    b_hn = b_hh[2 * H:]                                      # (H,) n-gate hidden bias

    # Gate-pad every 3H axis so each gate occupies a full Hp-lane block.
    def pad_gate_rows(m):                                    # (3H, K) -> (3*Hp, K)
        m3 = m.reshape(3, H, m.shape[-1])
        return jnp.pad(m3, ((0, 0), (0, Hp - H), (0, 0))).reshape(3 * Hp, m.shape[-1])

    def pad_gate_vec(v):                                     # (3H,) -> (3*Hp,)
        return jnp.pad(v.reshape(3, H), ((0, 0), (0, Hp - H))).reshape(3 * Hp)

    w_ih_p = pad_gate_rows(w_ih_fold)                        # (3*Hp, I)
    b_gx_p = pad_gate_vec(b_gx)                              # (3*Hp,)
    w_hh_p = jnp.pad(pad_gate_rows(w_hh), ((0, 0), (0, Hp - H)))   # (3*Hp, Hp)

    # Fold the b_gx bias into the input matmul as an extra K row (ones column on x).
    wih_t = jnp.concatenate([w_ih_p.T, b_gx_p[None, :]], axis=0)   # (I+1, 3*Hp)
    whh_t = w_hh_p.T                                               # (Hp, 3*Hp)

    vec = jnp.stack([jnp.pad(b_hn, (0, Hp - H)),
                     jnp.pad(output_mean, (0, Hp - H)),
                     jnp.pad(output_std, (0, Hp - H), constant_values=1.0)])  # (3, Hp)

    h0_p = jnp.pad(h0, ((0, 0), (0, 0), (0, Hp - H)))              # (1, 1, Hp)
    xw = jnp.concatenate([x, jnp.ones((B, T, 1), x.dtype)], axis=-1)  # (1, T, I+1)

    xw = xw.astype(param_dtype)
    wih_t = wih_t.astype(param_dtype)
    whh_t = whh_t.astype(param_dtype)
    # -------------------------------------------------------------------------

    vmem = pl.BlockSpec(memory_space=pltpu.MemorySpace.VMEM)

    y_p, hn_p = pl.pallas_call(
        _gru_scaled_kernel,
        out_shape=(
            jax.ShapeDtypeStruct((B, T, Hp), jnp.float32),
            jax.ShapeDtypeStruct((L, B, Hp), jnp.float32),
        ),
        in_specs=[vmem] * 5,
        out_specs=(vmem, vmem),
        scratch_shapes=[pltpu.VMEM((T, 3 * Hp), jnp.float32),
                        pltpu.VMEM((T, Hp), jnp.float32)],
    )(xw, h0_p, wih_t, whh_t, vec)

    return y_p[..., :H], hn_p[..., :H]


def _reference(x, h0, w_ih, w_hh, b_ih, b_hh,
               input_mean, input_std, output_mean, output_std):
    # Pure-JAX reference of the same forward pass (PyTorch GRU cell equations).
    H = h0.shape[-1]
    xn = (x - input_mean) / input_std

    def cell(h, x_t):
        gx = x_t @ w_ih.T + b_ih
        gh = h @ w_hh.T + b_hh
        r = jax.nn.sigmoid(gx[:, :H] + gh[:, :H])
        z = jax.nn.sigmoid(gx[:, H:2 * H] + gh[:, H:2 * H])
        n = jnp.tanh(gx[:, 2 * H:] + r * gh[:, 2 * H:])
        h_new = (1.0 - z) * n + z * h
        return h_new, h_new

    h_last, ys = lax.scan(cell, h0[0], jnp.swapaxes(xn, 0, 1))  # scan over time
    y = jnp.swapaxes(ys, 0, 1)                                  # (B, T, H)
    y = y * output_std + output_mean
    return y, h_last[None]


if __name__ == "__main__":
    B, T, I, H = 1, 8, 16, 32   # batch=1 (matches h0 buffer), seq=8, in=16, hidden=32
    L = 1                       # num_layers

    key = jax.random.PRNGKey(0)
    keys = jax.random.split(key, 10)

    x = jax.random.normal(keys[0], (B, T, I), dtype=jnp.float32)
    h0 = jnp.zeros((L, B, H), dtype=jnp.float32)          # wrapper's h0 buffer (reset state)

    w_ih = jax.random.normal(keys[1], (3 * H, I), dtype=jnp.float32) * 0.1
    w_hh = jax.random.normal(keys[2], (3 * H, H), dtype=jnp.float32) * 0.1
    b_ih = jax.random.normal(keys[3], (3 * H,), dtype=jnp.float32) * 0.1
    b_hh = jax.random.normal(keys[4], (3 * H,), dtype=jnp.float32) * 0.1

    input_mean = jax.random.normal(keys[5], (I,), dtype=jnp.float32)
    input_std = jnp.abs(jax.random.normal(keys[6], (I,), dtype=jnp.float32)) + 0.5
    output_mean = jax.random.normal(keys[7], (H,), dtype=jnp.float32)
    output_std = jnp.abs(jax.random.normal(keys[8], (H,), dtype=jnp.float32)) + 0.5

    y_ref, hn_ref = _reference(x, h0, w_ih, w_hh, b_ih, b_hh,
                               input_mean, input_std, output_mean, output_std)

    # f32 path (default; exact to 1e-4 vs reference).
    y, hn = scaled_gru_forward(x, h0, w_ih, w_hh, b_ih, b_hh,
                               input_mean, input_std, output_mean, output_std)
    jax.block_until_ready((y, hn))
    assert jnp.allclose(y, y_ref, atol=1e-4, rtol=1e-4), "f32 output mismatch vs reference"
    assert jnp.allclose(hn, hn_ref, atol=1e-4, rtol=1e-4), "f32 hidden state mismatch vs reference"

    # bf16-weight path (native MXU on v6e/v7x; f32 accumulate) -- looser tolerance.
    y_b, hn_b = scaled_gru_forward(x, h0, w_ih, w_hh, b_ih, b_hh,
                                   input_mean, input_std, output_mean, output_std,
                                   param_dtype=jnp.bfloat16)
    jax.block_until_ready((y_b, hn_b))
    assert jnp.allclose(y_b, y_ref, atol=5e-2, rtol=5e-2), "bf16 output mismatch vs reference"
    assert jnp.allclose(hn_b, hn_ref, atol=5e-2, rtol=5e-2), "bf16 hidden mismatch vs reference"

    print("KERNEL_OK")
</pallas_src>

<mosaic_0001>
module attributes {stable_mosaic.version = 11 : i64} {
  func.func @_gru_scaled_kernel(%arg0: memref<1x8x17xf32, #tpu.memory_space<vmem>>, %arg1: memref<1x1x128xf32, #tpu.memory_space<vmem>>, %arg2: memref<17x384xf32, #tpu.memory_space<vmem>>, %arg3: memref<128x384xf32, #tpu.memory_space<vmem>>, %arg4: memref<3x128xf32, #tpu.memory_space<vmem>>, %arg5: memref<1x8x128xf32, #tpu.memory_space<vmem>>, %arg6: memref<1x1x128xf32, #tpu.memory_space<vmem>>, %arg7: memref<8x384xf32, #tpu.memory_space<vmem>>, %arg8: memref<8x128xf32, #tpu.memory_space<vmem>>) attributes {dimension_semantics = [], scalar_prefetch = 0 : i64, scratch_operands = 2 : i64, tpu.core_type = #tpu.core_type<tc>} {
    %c0 = arith.constant 0 : index
    %c0_0 = arith.constant 0 : index
    %c0_1 = arith.constant 0 : index
    %0 = vector.load %arg0[%c0, %c0_0, %c0_1] : memref<1x8x17xf32, #tpu.memory_space<vmem>>, vector<1x8x17xf32>
    %1 = vector.shape_cast %0 : vector<1x8x17xf32> to vector<8x17xf32>
    %c0_2 = arith.constant 0 : index
    %c0_3 = arith.constant 0 : index
    %2 = vector.load %arg2[%c0_2, %c0_3] : memref<17x384xf32, #tpu.memory_space<vmem>>, vector<17x384xf32>
    %cst = arith.constant dense<0.000000e+00> : vector<8x384xf32>
    %3 = tpu.matmul %1, %2, %cst {dimension_numbers = #tpu.dot_dimension_numbers<[1], [0], [0], [1], [0, 0, 1, 1], [], []>} : vector<8x17xf32>, vector<17x384xf32>, vector<8x384xf32> -> vector<8x384xf32>
    %c0_4 = arith.constant 0 : index
    %c0_5 = arith.constant 0 : index
    %4 = vector.load %arg7[%c0_4, %c0_5] : memref<8x384xf32, #tpu.memory_space<vmem>>, vector<8x384xf32>
    tpu.vector_store %arg7[%c0_4, %c0_5], %3 {strides = array<i32>} : memref<8x384xf32, #tpu.memory_space<vmem>>, vector<8x384xf32>,
    %c0_6 = arith.constant 0 : index
    %c0_7 = arith.constant 0 : index
    %5 = vector.load %arg3[%c0_6, %c0_7] : memref<128x384xf32, #tpu.memory_space<vmem>>, vector<128x384xf32>
    %c0_8 = arith.constant 0 : index
    %c0_9 = arith.constant 0 : index
    %6 = vector.load %arg4[%c0_8, %c0_9] : memref<3x128xf32, #tpu.memory_space<vmem>>, vector<1x128xf32>
    %c0_10 = arith.constant 0 : index
    %c0_11 = arith.constant 0 : index
    %c0_12 = arith.constant 0 : index
    %7 = vector.load %arg1[%c0_10, %c0_11, %c0_12] : memref<1x1x128xf32, #tpu.memory_space<vmem>>, vector<1x1x128xf32>
    %8 = vector.shape_cast %7 : vector<1x1x128xf32> to vector<1x128xf32>
    %c0_i32 = arith.constant 0 : i32
    %9 = arith.index_cast %c0_i32 : i32 to index
    %c0_13 = arith.constant 0 : index
    %10 = vector.load %arg7[%9, %c0_13] : memref<8x384xf32, #tpu.memory_space<vmem>>, vector<1x384xf32>
    %cst_14 = arith.constant dense<0.000000e+00> : vector<1x384xf32>
    %11 = tpu.matmul %8, %5, %cst_14 {dimension_numbers = #tpu.dot_dimension_numbers<[1], [0], [0], [1], [0, 0, 1, 1], [], []>} : vector<1x128xf32>, vector<128x384xf32>, vector<1x384xf32> -> vector<1x384xf32>
    %12 = vector.extract_strided_slice %10 {offsets = [0, 0], sizes = [1, 128], strides = [1, 1]} : vector<1x384xf32> to vector<1x128xf32>
    %13 = vector.extract_strided_slice %11 {offsets = [0, 0], sizes = [1, 128], strides = [1, 1]} : vector<1x384xf32> to vector<1x128xf32>
    %14 = arith.addf %12, %13 : vector<1x128xf32>
    %15 = arith.negf %14 : vector<1x128xf32>
    %16 = math.exp %15 : vector<1x128xf32>
    %cst_15 = arith.constant 1.000000e+00 : f32
    %17 = vector.broadcast %cst_15 : f32 to vector<1x128xf32>
    %18 = arith.addf %17, %16 : vector<1x128xf32>
    %19 = arith.divf %17, %18 : vector<1x128xf32>
    %20 = vector.extract_strided_slice %10 {offsets = [0, 128], sizes = [1, 128], strides = [1, 1]} : vector<1x384xf32> to vector<1x128xf32>
    %21 = vector.extract_strided_slice %11 {offsets = [0, 128], sizes = [1, 128], strides = [1, 1]} : vector<1x384xf32> to vector<1x128xf32>
    %22 = arith.addf %20, %21 : vector<1x128xf32>
    %23 = arith.negf %22 : vector<1x128xf32>
    %24 = math.exp %23 : vector<1x128xf32>
    %cst_16 = arith.constant 1.000000e+00 : f32
    %25 = vector.broadcast %cst_16 : f32 to vector<1x128xf32>
    %26 = arith.addf %25, %24 : vector<1x128xf32>
    %27 = arith.divf %25, %26 : vector<1x128xf32>
    %28 = vector.extract_strided_slice %10 {offsets = [0, 256], sizes = [1, 128], strides = [1, 1]} : vector<1x384xf32> to vector<1x128xf32>
    %29 = vector.extract_strided_slice %11 {offsets = [0, 256], sizes = [1, 128], strides = [1, 1]} : vector<1x384xf32> to vector<1x128xf32>
    %30 = arith.addf %29, %6 : vector<1x128xf32>
    %31 = arith.mulf %19, %30 : vector<1x128xf32>
    %32 = arith.addf %28, %31 : vector<1x128xf32>
    %33 = math.tanh %32 : vector<1x128xf32>
    %cst_17 = arith.constant 1.000000e+00 : f32
    %34 = vector.broadcast %cst_17 : f32 to vector<1x128xf32>
    %35 = arith.subf %34, %27 : vector<1x128xf32>
    %36 = arith.mulf %35, %33 : vector<1x128xf32>
    %37 = arith.mulf %27, %8 : vector<1x128xf32>
    %38 = arith.addf %36, %37 : vector<1x128xf32>
    %39 = arith.index_cast %c0_i32 : i32 to index
    %c0_18 = arith.constant 0 : index
    %40 = vector.load %arg8[%39, %c0_18] : memref<8x128xf32, #tpu.memory_space<vmem>>, vector<1x128xf32>
    tpu.vector_store %arg8[%39, %c0_18], %38 {strides = array<i32>} : memref<8x128xf32, #tpu.memory_space<vmem>>, vector<1x128xf32>,
    %c1_i32 = arith.constant 1 : i32
    %41 = arith.index_cast %c1_i32 : i32 to index
    %c0_19 = arith.constant 0 : index
    %42 = vector.load %arg7[%41, %c0_19] : memref<8x384xf32, #tpu.memory_space<vmem>>, vector<1x384xf32>
    %cst_20 = arith.constant dense<0.000000e+00> : vector<1x384xf32>
    %43 = tpu.matmul %38, %5, %cst_20 {dimension_numbers = #tpu.dot_dimension_numbers<[1], [0], [0], [1], [0, 0, 1, 1], [], []>} : vector<1x128xf32>, vector<128x384xf32>, vector<1x384xf32> -> vector<1x384xf32>
    %44 = vector.extract_strided_slice %42 {offsets = [0, 0], sizes = [1, 128], strides = [1, 1]} : vector<1x384xf32> to vector<1x128xf32>
    %45 = vector.extract_strided_slice %43 {offsets = [0, 0], sizes = [1, 128], strides = [1, 1]} : vector<1x384xf32> to vector<1x128xf32>
    %46 = arith.addf %44, %45 : vector<1x128xf32>
    %47 = arith.negf %46 : vector<1x128xf32>
    %48 = math.exp %47 : vector<1x128xf32>
    %cst_21 = arith.constant 1.000000e+00 : f32
    %49 = vector.broadcast %cst_21 : f32 to vector<1x128xf32>
    %50 = arith.addf %49, %48 : vector<1x128xf32>
    %51 = arith.divf %49, %50 : vector<1x128xf32>
    %52 = vector.extract_strided_slice %42 {offsets = [0, 128], sizes = [1, 128], strides = [1, 1]} : vector<1x384xf32> to vector<1x128xf32>
    %53 = vector.extract_strided_slice %43 {offsets = [0, 128], sizes = [1, 128], strides = [1, 1]} : vector<1x384xf32> to vector<1x128xf32>
    %54 = arith.addf %52, %53 : vector<1x128xf32>
    %55 = arith.negf %54 : vector<1x128xf32>
    %56 = math.exp %55 : vector<1x128xf32>
    %cst_22 = arith.constant 1.000000e+00 : f32
    %57 = vector.broadcast %cst_22 : f32 to vector<1x128xf32>
    %58 = arith.addf %57, %56 : vector<1x128xf32>
    %59 = arith.divf %57, %58 : vector<1x128xf32>
    %60 = vector.extract_strided_slice %42 {offsets = [0, 256], sizes = [1, 128], strides = [1, 1]} : vector<1x384xf32> to vector<1x128xf32>
    %61 = vector.extract_strided_slice %43 {offsets = [0, 256], sizes = [1, 128], strides = [1, 1]} : vector<1x384xf32> to vector<1x128xf32>
    %62 = arith.addf %61, %6 : vector<1x128xf32>
    %63 = arith.mulf %51, %62 : vector<1x128xf32>
    %64 = arith.addf %60, %63 : vector<1x128xf32>
    %65 = math.tanh %64 : vector<1x128xf32>
    %cst_23 = arith.constant 1.000000e+00 : f32
    %66 = vector.broadcast %cst_23 : f32 to vector<1x128xf32>
    %67 = arith.subf %66, %59 : vector<1x128xf32>
    %68 = arith.mulf %67, %65 : vector<1x128xf32>
    %69 = arith.mulf %59, %38 : vector<1x128xf32>
    %70 = arith.addf %68, %69 : vector<1x128xf32>
    %71 = arith.index_cast %c1_i32 : i32 to index
    %c0_24 = arith.constant 0 : index
    %72 = vector.load %arg8[%71, %c0_24] : memref<8x128xf32, #tpu.memory_space<vmem>>, vector<1x128xf32>
    tpu.vector_store %arg8[%71, %c0_24], %70 {strides = array<i32>} : memref<8x128xf32, #tpu.memory_space<vmem>>, vector<1x128xf32>,
    %c2_i32 = arith.constant 2 : i32
    %73 = arith.index_cast %c2_i32 : i32 to index
    %c0_25 = arith.constant 0 : index
    %74 = vector.load %arg7[%73, %c0_25] : memref<8x384xf32, #tpu.memory_space<vmem>>, vector<1x384xf32>
    %cst_26 = arith.constant dense<0.000000e+00> : vector<1x384xf32>
    %75 = tpu.matmul %70, %5, %cst_26 {dimension_numbers = #tpu.dot_dimension_numbers<[1], [0], [0], [1], [0, 0, 1, 1], [], []>} : vector<1x128xf32>, vector<128x384xf32>, vector<1x384xf32> -> vector<1x384xf32>
    %76 = vector.extract_strided_slice %74 {offsets = [0, 0], sizes = [1, 128], strides = [1, 1]} : vector<1x384xf32> to vector<1x128xf32>
    %77 = vector.extract_strided_slice %75 {offsets = [0, 0], sizes = [1, 128], strides = [1, 1]} : vector<1x384xf32> to vector<1x128xf32>
    %78 = arith.addf %76, %77 : vector<1x128xf32>
    %79 = arith.negf %78 : vector<1x128xf32>
    %80 = math.exp %79 : vector<1x128xf32>
    %cst_27 = arith.constant 1.000000e+00 : f32
    %81 = vector.broadcast %cst_27 : f32 to vector<1x128xf32>
    %82 = arith.addf %81, %80 : vector<1x128xf32>
    %83 = arith.divf %81, %82 : vector<1x128xf32>
    %84 = vector.extract_strided_slice %74 {offsets = [0, 128], sizes = [1, 128], strides = [1, 1]} : vector<1x384xf32> to vector<1x128xf32>
    %85 = vector.extract_strided_slice %75 {offsets = [0, 128], sizes = [1, 128], strides = [1, 1]} : vector<1x384xf32> to vector<1x128xf32>
    %86 = arith.addf %84, %85 : vector<1x128xf32>
    %87 = arith.negf %86 : vector<1x128xf32>
    %88 = math.exp %87 : vector<1x128xf32>
    %cst_28 = arith.constant 1.000000e+00 : f32
    %89 = vector.broadcast %cst_28 : f32 to vector<1x128xf32>
    %90 = arith.addf %89, %88 : vector<1x128xf32>
    %91 = arith.divf %89, %90 : vector<1x128xf32>
    %92 = vector.extract_strided_slice %74 {offsets = [0, 256], sizes = [1, 128], strides = [1, 1]} : vector<1x384xf32> to vector<1x128xf32>
    %93 = vector.extract_strided_slice %75 {offsets = [0, 256], sizes = [1, 128], strides = [1, 1]} : vector<1x384xf32> to vector<1x128xf32>
    %94 = arith.addf %93, %6 : vector<1x128xf32>
    %95 = arith.mulf %83, %94 : vector<1x128xf32>
    %96 = arith.addf %92, %95 : vector<1x128xf32>
    %97 = math.tanh %96 : vector<1x128xf32>
    %cst_29 = arith.constant 1.000000e+00 : f32
    %98 = vector.broadcast %cst_29 : f32 to vector<1x128xf32>
    %99 = arith.subf %98, %91 : vector<1x128xf32>
    %100 = arith.mulf %99, %97 : vector<1x128xf32>
    %101 = arith.mulf %91, %70 : vector<1x128xf32>
    %102 = arith.addf %100, %101 : vector<1x128xf32>
    %103 = arith.index_cast %c2_i32 : i32 to index
    %c0_30 = arith.constant 0 : index
    %104 = vector.load %arg8[%103, %c0_30] : memref<8x128xf32, #tpu.memory_space<vmem>>, vector<1x128xf32>
    tpu.vector_store %arg8[%103, %c0_30], %102 {strides = array<i32>} : memref<8x128xf32, #tpu.memory_space<vmem>>, vector<1x128xf32>,
    %c3_i32 = arith.constant 3 : i32
    %105 = arith.index_cast %c3_i32 : i32 to index
    %c0_31 = arith.constant 0 : index
    %106 = vector.load %arg7[%105, %c0_31] : memref<8x384xf32, #tpu.memory_space<vmem>>, vector<1x384xf32>
    %cst_32 = arith.constant dense<0.000000e+00> : vector<1x384xf32>
    %107 = tpu.matmul %102, %5, %cst_32 {dimension_numbers = #tpu.dot_dimension_numbers<[1], [0], [0], [1], [0, 0, 1, 1], [], []>} : vector<1x128xf32>, vector<128x384xf32>, vector<1x384xf32> -> vector<1x384xf32>
    %108 = vector.extract_strided_slice %106 {offsets = [0, 0], sizes = [1, 128], strides = [1, 1]} : vector<1x384xf32> to vector<1x128xf32>
    %109 = vector.extract_strided_slice %107 {offsets = [0, 0], sizes = [1, 128], strides = [1, 1]} : vector<1x384xf32> to vector<1x128xf32>
    %110 = arith.addf %108, %109 : vector<1x128xf32>
    %111 = arith.negf %110 : vector<1x128xf32>
    %112 = math.exp %111 : vector<1x128xf32>
    %cst_33 = arith.constant 1.000000e+00 : f32
    %113 = vector.broadcast %cst_33 : f32 to vector<1x128xf32>
    %114 = arith.addf %113, %112 : vector<1x128xf32>
    %115 = arith.divf %113, %114 : vector<1x128xf32>
    %116 = vector.extract_strided_slice %106 {offsets = [0, 128], sizes = [1, 128], strides = [1, 1]} : vector<1x384xf32> to vector<1x128xf32>
    %117 = vector.extract_strided_slice %107 {offsets = [0, 128], sizes = [1, 128], strides = [1, 1]} : vector<1x384xf32> to vector<1x128xf32>
    %118 = arith.addf %116, %117 : vector<1x128xf32>
    %119 = arith.negf %118 : vector<1x128xf32>
    %120 = math.exp %119 : vector<1x128xf32>
    %cst_34 = arith.constant 1.000000e+00 : f32
    %121 = vector.broadcast %cst_34 : f32 to vector<1x128xf32>
    %122 = arith.addf %121, %120 : vector<1x128xf32>
    %123 = arith.divf %121, %122 : vector<1x128xf32>
    %124 = vector.extract_strided_slice %106 {offsets = [0, 256], sizes = [1, 128], strides = [1, 1]} : vector<1x384xf32> to vector<1x128xf32>
    %125 = vector.extract_strided_slice %107 {offsets = [0, 256], sizes = [1, 128], strides = [1, 1]} : vector<1x384xf32> to vector<1x128xf32>
    %126 = arith.addf %125, %6 : vector<1x128xf32>
    %127 = arith.mulf %115, %126 : vector<1x128xf32>
    %128 = arith.addf %124, %127 : vector<1x128xf32>
    %129 = math.tanh %128 : vector<1x128xf32>
    %cst_35 = arith.constant 1.000000e+00 : f32
    %130 = vector.broadcast %cst_35 : f32 to vector<1x128xf32>
    %131 = arith.subf %130, %123 : vector<1x128xf32>
    %132 = arith.mulf %131, %129 : vector<1x128xf32>
    %133 = arith.mulf %123, %102 : vector<1x128xf32>
    %134 = arith.addf %132, %133 : vector<1x128xf32>
    %135 = arith.index_cast %c3_i32 : i32 to index
    %c0_36 = arith.constant 0 : index
    %136 = vector.load %arg8[%135, %c0_36] : memref<8x128xf32, #tpu.memory_space<vmem>>, vector<1x128xf32>
    tpu.vector_store %arg8[%135, %c0_36], %134 {strides = array<i32>} : memref<8x128xf32, #tpu.memory_space<vmem>>, vector<1x128xf32>,
    %c4_i32 = arith.constant 4 : i32
    %137 = arith.index_cast %c4_i32 : i32 to index
    %c0_37 = arith.constant 0 : index
    %138 = vector.load %arg7[%137, %c0_37] : memref<8x384xf32, #tpu.memory_space<vmem>>, vector<1x384xf32>
    %cst_38 = arith.constant dense<0.000000e+00> : vector<1x384xf32>
    %139 = tpu.matmul %134, %5, %cst_38 {dimension_numbers = #tpu.dot_dimension_numbers<[1], [0], [0], [1], [0, 0, 1, 1], [], []>} : vector<1x128xf32>, vector<128x384xf32>, vector<1x384xf32> -> vector<1x384xf32>
    %140 = vector.extract_strided_slice %138 {offsets = [0, 0], sizes = [1, 128], strides = [1, 1]} : vector<1x384xf32> to vector<1x128xf32>
    %141 = vector.extract_strided_slice %139 {offsets = [0, 0], sizes = [1, 128], strides = [1, 1]} : vector<1x384xf32> to vector<1x128xf32>
    %142 = arith.addf %140, %141 : vector<1x128xf32>
    %143 = arith.negf %142 : vector<1x128xf32>
    %144 = math.exp %143 : vector<1x128xf32>
    %cst_39 = arith.constant 1.000000e+00 : f32
    %145 = vector.broadcast %cst_39 : f32 to vector<1x128xf32>
    %146 = arith.addf %145, %144 : vector<1x128xf32>
    %147 = arith.divf %145, %146 : vector<1x128xf32>
    %148 = vector.extract_strided_slice %138 {offsets = [0, 128], sizes = [1, 128], strides = [1, 1]} : vector<1x384xf32> to vector<1x128xf32>
    %149 = vector.extract_strided_slice %139 {offsets = [0, 128], sizes = [1, 128], strides = [1, 1]} : vector<1x384xf32> to vector<1x128xf32>
    %150 = arith.addf %148, %149 : vector<1x128xf32>
    %151 = arith.negf %150 : vector<1x128xf32>
    %152 = math.exp %151 : vector<1x128xf32>
    %cst_40 = arith.constant 1.000000e+00 : f32
    %153 = vector.broadcast %cst_40 : f32 to vector<1x128xf32>
    %154 = arith.addf %153, %152 : vector<1x128xf32>
    %155 = arith.divf %153, %154 : vector<1x128xf32>
    %156 = vector.extract_strided_slice %138 {offsets = [0, 256], sizes = [1, 128], strides = [1, 1]} : vector<1x384xf32> to vector<1x128xf32>
    %157 = vector.extract_strided_slice %139 {offsets = [0, 256], sizes = [1, 128], strides = [1, 1]} : vector<1x384xf32> to vector<1x128xf32>
    %158 = arith.addf %157, %6 : vector<1x128xf32>
    %159 = arith.mulf %147, %158 : vector<1x128xf32>
    %160 = arith.addf %156, %159 : vector<1x128xf32>
    %161 = math.tanh %160 : vector<1x128xf32>
    %cst_41 = arith.constant 1.000000e+00 : f32
    %162 = vector.broadcast %cst_41 : f32 to vector<1x128xf32>
    %163 = arith.subf %162, %155 : vector<1x128xf32>
    %164 = arith.mulf %163, %161 : vector<1x128xf32>
    %165 = arith.mulf %155, %134 : vector<1x128xf32>
    %166 = arith.addf %164, %165 : vector<1x128xf32>
    %167 = arith.index_cast %c4_i32 : i32 to index
    %c0_42 = arith.constant 0 : index
    %168 = vector.load %arg8[%167, %c0_42] : memref<8x128xf32, #tpu.memory_space<vmem>>, vector<1x128xf32>
    tpu.vector_store %arg8[%167, %c0_42], %166 {strides = array<i32>} : memref<8x128xf32, #tpu.memory_space<vmem>>, vector<1x128xf32>,
    %c5_i32 = arith.constant 5 : i32
    %169 = arith.index_cast %c5_i32 : i32 to index
    %c0_43 = arith.constant 0 : index
    %170 = vector.load %arg7[%169, %c0_43] : memref<8x384xf32, #tpu.memory_space<vmem>>, vector<1x384xf32>
    %cst_44 = arith.constant dense<0.000000e+00> : vector<1x384xf32>
    %171 = tpu.matmul %166, %5, %cst_44 {dimension_numbers = #tpu.dot_dimension_numbers<[1], [0], [0], [1], [0, 0, 1, 1], [], []>} : vector<1x128xf32>, vector<128x384xf32>, vector<1x384xf32> -> vector<1x384xf32>
    %172 = vector.extract_strided_slice %170 {offsets = [0, 0], sizes = [1, 128], strides = [1, 1]} : vector<1x384xf32> to vector<1x128xf32>
    %173 = vector.extract_strided_slice %171 {offsets = [0, 0], sizes = [1, 128], strides = [1, 1]} : vector<1x384xf32> to vector<1x128xf32>
    %174 = arith.addf %172, %173 : vector<1x128xf32>
    %175 = arith.negf %174 : vector<1x128xf32>
    %176 = math.exp %175 : vector<1x128xf32>
    %cst_45 = arith.constant 1.000000e+00 : f32
    %177 = vector.broadcast %cst_45 : f32 to vector<1x128xf32>
    %178 = arith.addf %177, %176 : vector<1x128xf32>
    %179 = arith.divf %177, %178 : vector<1x128xf32>
    %180 = vector.extract_strided_slice %170 {offsets = [0, 128], sizes = [1, 128], strides = [1, 1]} : vector<1x384xf32> to vector<1x128xf32>
    %181 = vector.extract_strided_slice %171 {offsets = [0, 128], sizes = [1, 128], strides = [1, 1]} : vector<1x384xf32> to vector<1x128xf32>
    %182 = arith.addf %180, %181 : vector<1x128xf32>
    %183 = arith.negf %182 : vector<1x128xf32>
    %184 = math.exp %183 : vector<1x128xf32>
    %cst_46 = arith.constant 1.000000e+00 : f32
    %185 = vector.broadcast %cst_46 : f32 to vector<1x128xf32>
    %186 = arith.addf %185, %184 : vector<1x128xf32>
    %187 = arith.divf %185, %186 : vector<1x128xf32>
    %188 = vector.extract_strided_slice %170 {offsets = [0, 256], sizes = [1, 128], strides = [1, 1]} : vector<1x384xf32> to vector<1x128xf32>
    %189 = vector.extract_strided_slice %171 {offsets = [0, 256], sizes = [1, 128], strides = [1, 1]} : vector<1x384xf32> to vector<1x128xf32>
    %190 = arith.addf %189, %6 : vector<1x128xf32>
    %191 = arith.mulf %179, %190 : vector<1x128xf32>
    %192 = arith.addf %188, %191 : vector<1x128xf32>
    %193 = math.tanh %192 : vector<1x128xf32>
    %cst_47 = arith.constant 1.000000e+00 : f32
    %194 = vector.broadcast %cst_47 : f32 to vector<1x128xf32>
    %195 = arith.subf %194, %187 : vector<1x128xf32>
    %196 = arith.mulf %195, %193 : vector<1x128xf32>
    %197 = arith.mulf %187, %166 : vector<1x128xf32>
    %198 = arith.addf %196, %197 : vector<1x128xf32>
    %199 = arith.index_cast %c5_i32 : i32 to index
    %c0_48 = arith.constant 0 : index
    %200 = vector.load %arg8[%199, %c0_48] : memref<8x128xf32, #tpu.memory_space<vmem>>, vector<1x128xf32>
    tpu.vector_store %arg8[%199, %c0_48], %198 {strides = array<i32>} : memref<8x128xf32, #tpu.memory_space<vmem>>, vector<1x128xf32>,
    %c6_i32 = arith.constant 6 : i32
    %201 = arith.index_cast %c6_i32 : i32 to index
    %c0_49 = arith.constant 0 : index
    %202 = vector.load %arg7[%201, %c0_49] : memref<8x384xf32, #tpu.memory_space<vmem>>, vector<1x384xf32>
    %cst_50 = arith.constant dense<0.000000e+00> : vector<1x384xf32>
    %203 = tpu.matmul %198, %5, %cst_50 {dimension_numbers = #tpu.dot_dimension_numbers<[1], [0], [0], [1], [0, 0, 1, 1], [], []>} : vector<1x128xf32>, vector<128x384xf32>, vector<1x384xf32> -> vector<1x384xf32>
    %204 = vector.extract_strided_slice %202 {offsets = [0, 0], sizes = [1, 128], strides = [1, 1]} : vector<1x384xf32> to vector<1x128xf32>
    %205 = vector.extract_strided_slice %203 {offsets = [0, 0], sizes = [1, 128], strides = [1, 1]} : vector<1x384xf32> to vector<1x128xf32>
    %206 = arith.addf %204, %205 : vector<1x128xf32>
    %207 = arith.negf %206 : vector<1x128xf32>
    %208 = math.exp %207 : vector<1x128xf32>
    %cst_51 = arith.constant 1.000000e+00 : f32
    %209 = vector.broadcast %cst_51 : f32 to vector<1x128xf32>
    %210 = arith.addf %209, %208 : vector<1x128xf32>
    %211 = arith.divf %209, %210 : vector<1x128xf32>
    %212 = vector.extract_strided_slice %202 {offsets = [0, 128], sizes = [1, 128], strides = [1, 1]} : vector<1x384xf32> to vector<1x128xf32>
    %213 = vector.extract_strided_slice %203 {offsets = [0, 128], sizes = [1, 128], strides = [1, 1]} : vector<1x384xf32> to vector<1x128xf32>
    %214 = arith.addf %212, %213 : vector<1x128xf32>
    %215 = arith.negf %214 : vector<1x128xf32>
    %216 = math.exp %215 : vector<1x128xf32>
    %cst_52 = arith.constant 1.000000e+00 : f32
    %217 = vector.broadcast %cst_52 : f32 to vector<1x128xf32>
    %218 = arith.addf %217, %216 : vector<1x128xf32>
    %219 = arith.divf %217, %218 : vector<1x128xf32>
    %220 = vector.extract_strided_slice %202 {offsets = [0, 256], sizes = [1, 128], strides = [1, 1]} : vector<1x384xf32> to vector<1x128xf32>
    %221 = vector.extract_strided_slice %203 {offsets = [0, 256], sizes = [1, 128], strides = [1, 1]} : vector<1x384xf32> to vector<1x128xf32>
    %222 = arith.addf %221, %6 : vector<1x128xf32>
    %223 = arith.mulf %211, %222 : vector<1x128xf32>
    %224 = arith.addf %220, %223 : vector<1x128xf32>
    %225 = math.tanh %224 : vector<1x128xf32>
    %cst_53 = arith.constant 1.000000e+00 : f32
    %226 = vector.broadcast %cst_53 : f32 to vector<1x128xf32>
    %227 = arith.subf %226, %219 : vector<1x128xf32>
    %228 = arith.mulf %227, %225 : vector<1x128xf32>
    %229 = arith.mulf %219, %198 : vector<1x128xf32>
    %230 = arith.addf %228, %229 : vector<1x128xf32>
    %231 = arith.index_cast %c6_i32 : i32 to index
    %c0_54 = arith.constant 0 : index
    %232 = vector.load %arg8[%231, %c0_54] : memref<8x128xf32, #tpu.memory_space<vmem>>, vector<1x128xf32>
    tpu.vector_store %arg8[%231, %c0_54], %230 {strides = array<i32>} : memref<8x128xf32, #tpu.memory_space<vmem>>, vector<1x128xf32>,
    %c7_i32 = arith.constant 7 : i32
    %233 = arith.index_cast %c7_i32 : i32 to index
    %c0_55 = arith.constant 0 : index
    %234 = vector.load %arg7[%233, %c0_55] : memref<8x384xf32, #tpu.memory_space<vmem>>, vector<1x384xf32>
    %cst_56 = arith.constant dense<0.000000e+00> : vector<1x384xf32>
    %235 = tpu.matmul %230, %5, %cst_56 {dimension_numbers = #tpu.dot_dimension_numbers<[1], [0], [0], [1], [0, 0, 1, 1], [], []>} : vector<1x128xf32>, vector<128x384xf32>, vector<1x384xf32> -> vector<1x384xf32>
    %236 = vector.extract_strided_slice %234 {offsets = [0, 0], sizes = [1, 128], strides = [1, 1]} : vector<1x384xf32> to vector<1x128xf32>
    %237 = vector.extract_strided_slice %235 {offsets = [0, 0], sizes = [1, 128], strides = [1, 1]} : vector<1x384xf32> to vector<1x128xf32>
    %238 = arith.addf %236, %237 : vector<1x128xf32>
    %239 = arith.negf %238 : vector<1x128xf32>
    %240 = math.exp %239 : vector<1x128xf32>
    %cst_57 = arith.constant 1.000000e+00 : f32
    %241 = vector.broadcast %cst_57 : f32 to vector<1x128xf32>
    %242 = arith.addf %241, %240 : vector<1x128xf32>
    %243 = arith.divf %241, %242 : vector<1x128xf32>
    %244 = vector.extract_strided_slice %234 {offsets = [0, 128], sizes = [1, 128], strides = [1, 1]} : vector<1x384xf32> to vector<1x128xf32>
    %245 = vector.extract_strided_slice %235 {offsets = [0, 128], sizes = [1, 128], strides = [1, 1]} : vector<1x384xf32> to vector<1x128xf32>
    %246 = arith.addf %244, %245 : vector<1x128xf32>
    %247 = arith.negf %246 : vector<1x128xf32>
    %248 = math.exp %247 : vector<1x128xf32>
    %cst_58 = arith.constant 1.000000e+00 : f32
    %249 = vector.broadcast %cst_58 : f32 to vector<1x128xf32>
    %250 = arith.addf %249, %248 : vector<1x128xf32>
    %251 = arith.divf %249, %250 : vector<1x128xf32>
    %252 = vector.extract_strided_slice %234 {offsets = [0, 256], sizes = [1, 128], strides = [1, 1]} : vector<1x384xf32> to vector<1x128xf32>
    %253 = vector.extract_strided_slice %235 {offsets = [0, 256], sizes = [1, 128], strides = [1, 1]} : vector<1x384xf32> to vector<1x128xf32>
    %254 = arith.addf %253, %6 : vector<1x128xf32>
    %255 = arith.mulf %243, %254 : vector<1x128xf32>
    %256 = arith.addf %252, %255 : vector<1x128xf32>
    %257 = math.tanh %256 : vector<1x128xf32>
    %cst_59 = arith.constant 1.000000e+00 : f32
    %258 = vector.broadcast %cst_59 : f32 to vector<1x128xf32>
    %259 = arith.subf %258, %251 : vector<1x128xf32>
    %260 = arith.mulf %259, %257 : vector<1x128xf32>
    %261 = arith.mulf %251, %230 : vector<1x128xf32>
    %262 = arith.addf %260, %261 : vector<1x128xf32>
    %263 = arith.index_cast %c7_i32 : i32 to index
    %c0_60 = arith.constant 0 : index
    %264 = vector.load %arg8[%263, %c0_60] : memref<8x128xf32, #tpu.memory_space<vmem>>, vector<1x128xf32>
    tpu.vector_store %arg8[%263, %c0_60], %262 {strides = array<i32>} : memref<8x128xf32, #tpu.memory_space<vmem>>, vector<1x128xf32>,
    %c8_i32 = arith.constant 8 : i32
    %c1 = arith.constant 1 : index
    %c0_61 = arith.constant 0 : index
    %265 = vector.load %arg4[%c1, %c0_61] : memref<3x128xf32, #tpu.memory_space<vmem>>, vector<1x128xf32>
    %c2 = arith.constant 2 : index
    %c0_62 = arith.constant 0 : index
    %266 = vector.load %arg4[%c2, %c0_62] : memref<3x128xf32, #tpu.memory_space<vmem>>, vector<1x128xf32>
    %c0_63 = arith.constant 0 : index
    %c0_64 = arith.constant 0 : index
    %267 = vector.load %arg8[%c0_63, %c0_64] : memref<8x128xf32, #tpu.memory_space<vmem>>, vector<8x128xf32>
    %268 = vector.broadcast %266 : vector<1x128xf32> to vector<8x128xf32>
    %269 = arith.mulf %267, %268 : vector<8x128xf32>
    %270 = vector.broadcast %265 : vector<1x128xf32> to vector<8x128xf32>
    %271 = arith.addf %269, %270 : vector<8x128xf32>
    %c0_65 = arith.constant 0 : index
    %c0_66 = arith.constant 0 : index
    %c0_67 = arith.constant 0 : index
    %272 = vector.load %arg5[%c0_65, %c0_66, %c0_67] : memref<1x8x128xf32, #tpu.memory_space<vmem>>, vector<1x8x128xf32>
    %273 = vector.shape_cast %272 : vector<1x8x128xf32> to vector<8x128xf32>
    %274 = vector.shape_cast %271 : vector<8x128xf32> to vector<1x8x128xf32>
    tpu.vector_store %arg5[%c0_65, %c0_66, %c0_67], %274 {strides = array<i32>} : memref<1x8x128xf32, #tpu.memory_space<vmem>>, vector<1x8x128xf32>,
    %c0_68 = arith.constant 0 : index
    %c0_69 = arith.constant 0 : index
    %c0_70 = arith.constant 0 : index
    %275 = vector.load %arg6[%c0_68, %c0_69, %c0_70] : memref<1x1x128xf32, #tpu.memory_space<vmem>>, vector<1x1x128xf32>
    %276 = vector.shape_cast %275 : vector<1x1x128xf32> to vector<1x128xf32>
    %277 = vector.shape_cast %262 : vector<1x128xf32> to vector<1x1x128xf32>
    tpu.vector_store %arg6[%c0_68, %c0_69, %c0_70], %277 {strides = array<i32>} : memref<1x1x128xf32, #tpu.memory_space<vmem>>, vector<1x1x128xf32>,
    return
  }
}

</mosaic_0001>

<llo_original>
// kernel: tpu_custom_call.1
$region0: #{tpu_custom_call.1}
  #allocation0 [shape = 'u32[]', space=smem, size = 0x4, offset = 0x4, fixed_abs, tag = 'smem constant byte address 0x4 - core index']
  #allocation1 [shape = 'u32[144,128]{1,0:T(1,128)}', space=vmem, size = 0x12000, scoped, tag = 'internal scratch']
  #allocation2 [shape = 'f32[8,384]{1,0:T(8,128)}', space=vmem, size = 0x3000, scoped, tag = 'scratch operand']
  #allocation3 [shape = 'f32[8,128]{1,0:T(8,128)}', space=vmem, size = 0x1000, scoped, tag = 'scratch operand']
  %s0 = inlined_call_operand.hbm [shape: f32[1,8,17], index: 0, kind: input, shape index: {}]
  %s1 = inlined_call_operand.vmem [shape: f32[1,1,128], index: 1, kind: input, shape index: {}]
  %s2 = inlined_call_operand.hbm [shape: f32[17,384], index: 2, kind: input, shape index: {}]
  %s3 = inlined_call_operand.hbm [shape: f32[128,384], index: 3, kind: input, shape index: {}]
  %s4 = inlined_call_operand.vmem [shape: f32[3,128], index: 4, kind: input, shape index: {}]
  %s5 = inlined_call_operand.hbm [shape: f32[1,8,128], index: 5, kind: output, shape index: {0}]
  %s6 = inlined_call_operand.hbm [shape: f32[1,1,128], index: 6, kind: output, shape index: {1}]
  %7 = xla_tuple %s5, %s6
  %s8 = sld [smem:[#allocation0]]
  $region50: #{tpu_custom_call.1} parent=0
    _
  %s10 = ssub.s32 1, %s8
  %s11 = scalar_select 0, %s10, %s8
  $region1: #{tpu_custom_call.1} parent=0
    #allocation4 [shape = 'u8[4096]{0}', space=vmem, size = 0x1000, scoped, tag = 'input window, operand 0, single buffered']
    #allocation5 [shape = 's32[1]{0}', space=sflag, size = 0x4, scoped, tag = 'scoped memory for tpu_custom_call.1']
    #allocation6 [shape = 's32[1]{0}', space=sflag, size = 0x4, scoped, tag = 'scoped memory for tpu_custom_call.1']
    #allocation7 [shape = 'u8[36864]{0}', space=vmem, size = 0x9000, scoped, tag = 'input window, operand 2, single buffered']
    #allocation8 [shape = 's32[1]{0}', space=sflag, size = 0x4, scoped, tag = 'scoped memory for tpu_custom_call.1']
    #allocation9 [shape = 'u8[196608]{0}', space=vmem, size = 0x30000, scoped, tag = 'input window, operand 3, single buffered']
    #allocation10 [shape = 'u8[4096]{0}', space=vmem, size = 0x1000, scoped, tag = 'output window, operand 0, single buffered']
    #allocation11 [shape = 'u8[512]{0}', space=vmem, size = 0x400, scoped, tag = 'output window, operand 1, single buffered']
    #allocation12 [shape = 's32[1]{0}', space=sflag, size = 0x4, scoped, tag = 'scoped memory for tpu_custom_call.1']
    %12 = vsyncpa [#allocation5], 0
    %13 = vsyncpa [#allocation8], 0
    %14 = vsyncpa [#allocation6], 0
    %15 = vsyncpa [#allocation12], 0
    // Predicated region
    $region2: #{tpu_custom_call.1} parent=1 // pred_check
      _
    $region3: #{tpu_custom_call.1} parent=1 // pred_check_branch
      %17 = sbr.rel (0) target = $region5
    $region4: #{tpu_custom_call.1} parent=1 // pred_region
      %s19 = ssub.s32 128, 128
      %20 = vsyncadd [#allocation5], %s19
      %s22 = sshll.u32 [#allocation4], 4
      %s23 = int_to_ptr.vmem [resolvable:$true] %s22
      %25 = dma.hbm_to_vmem [thread:$0]  %s0, 128, %s23, [#allocation5]
    $region5: #{tpu_custom_call.1} parent=1 // pred_fallthru
      _
    // Predicated region
    $region6: #{tpu_custom_call.1} parent=1 // pred_check
      _
    $region7: #{tpu_custom_call.1} parent=1 // pred_check_branch
      %27 = sbr.rel (0) target = $region9
    $region8: #{tpu_custom_call.1} parent=1 // pred_region
      _
    $region9: #{tpu_custom_call.1} parent=1 // pred_fallthru
      _
    // Predicated region
    $region10: #{tpu_custom_call.1} parent=1 // pred_check
      _
    $region11: #{tpu_custom_call.1} parent=1 // pred_check_branch
      %29 = sbr.rel (0) target = $region13
    $region12: #{tpu_custom_call.1} parent=1 // pred_region
      %s31 = ssub.s32 1152, 1152
      %32 = vsyncadd [#allocation8], %s31
      %s33 = sshll.u32 [#allocation7], 4
      %s34 = int_to_ptr.vmem [resolvable:$true] %s33
      %39 = dma.hbm_to_vmem [thread:$0]  %s2, 1152, %s34, [#allocation8], 384, 384, 24
    $region13: #{tpu_custom_call.1} parent=1 // pred_fallthru
      _
    // Predicated region
    $region14: #{tpu_custom_call.1} parent=1 // pred_check
      _
    $region15: #{tpu_custom_call.1} parent=1 // pred_check_branch
      %41 = sbr.rel (0) target = $region17
    $region16: #{tpu_custom_call.1} parent=1 // pred_region
      %s43 = ssub.s32 6144, 6144
      %44 = vsyncadd [#allocation8], %s43
      %s45 = sshll.u32 [#allocation9], 4
      %s46 = int_to_ptr.vmem [resolvable:$true] %s45
      %51 = dma.hbm_to_vmem [thread:$0]  %s3, 6144, %s46, [#allocation8], 384, 384, 24
    $region17: #{tpu_custom_call.1} parent=1 // pred_fallthru
      _
    // Predicated region
    $region18: #{tpu_custom_call.1} parent=1 // pred_check
      _
    $region19: #{tpu_custom_call.1} parent=1 // pred_check_branch
      %53 = sbr.rel (0) target = $region21
    $region20: #{tpu_custom_call.1} parent=1 // pred_region
      _
    $region21: #{tpu_custom_call.1} parent=1 // pred_fallthru
      _
    // Predicated region
    $region22: #{tpu_custom_call.1} parent=1 // pred_check
      _
    $region23: #{tpu_custom_call.1} parent=1 // pred_check_branch
      %55 = sbr.rel (0) target = $region25
    $region24: #{tpu_custom_call.1} parent=1 // pred_region
      %56 = dma.done [#allocation5], 128
    $region25: #{tpu_custom_call.1} parent=1 // pred_fallthru
      _
    // Predicated region
    $region26: #{tpu_custom_call.1} parent=1 // pred_check
      _
    $region27: #{tpu_custom_call.1} parent=1 // pred_check_branch
      %58 = sbr.rel (0) target = $region29
    $region28: #{tpu_custom_call.1} parent=1 // pred_region
      %59 = dma.done [#allocation8], 1152
    $region29: #{tpu_custom_call.1} parent=1 // pred_fallthru
      _
    // Predicated region
    $region30: #{tpu_custom_call.1} parent=1 // pred_check
      _
    $region31: #{tpu_custom_call.1} parent=1 // pred_check_branch
      %61 = sbr.rel (0) target = $region33
    $region32: #{tpu_custom_call.1} parent=1 // pred_region
      %62 = dma.done [#allocation8], 6144
    $region33: #{tpu_custom_call.1} parent=1 // pred_fallthru
      _
    %v63 = vld [vmem:[#allocation4] sm:$0xff]
    %v64 = vld [vmem:[#allocation7] sm:$0xff]
    %v65 = vld [vmem:[#allocation7 + $0x8] sm:$0xff]
    %v66 = vld [vmem:[#allocation7 + $0x10] sm:$0xff]
    %v67 = vld [vmem:[#allocation7 + $0x18] sm:$0xff]
    %v68 = vld [vmem:[#allocation7 + $0x20] sm:$0xff]
    %v69 = vld [vmem:[#allocation7 + $0x28] sm:$0xff]
    %v70 = vld [vmem:[#allocation7 + $0x30] sm:$0x1]
    %v71 = vld [vmem:[#allocation7 + $0x38] sm:$0x1]
    %v72 = vld [vmem:[#allocation7 + $0x40] sm:$0x1]
    %vm73 = vcmask 138240
    %v75 = vsel %vm73, %v63, 0
    %vm77 = vcmask 1040384
    %v79 = vsel %vm77, %v70, 0
    %v82 = vsel %vm77, %v71, 0
    %v85 = vsel %vm77, %v72, 0
    %87 = vmatprep.subr.mxu0 0.0
    %88 = vmatpush1.msra.mxu0 0.0
    %89 = vmatprep.subr.mxu0 0.0
    %90 = vmatpush1.msra.mxu0 0.0
    %91 = vmatprep.subr.mxu0 0.0
    %92 = vmatpush1.msra.mxu0 0.0
    %93 = vmatprep.subr.mxu0 0.0
    %94 = vmatpush1.msra.mxu0 0.0
    %95 = vmatprep.subr.mxu0 0.0
    %96 = vmatpush1.msra.mxu0 0.0
    %97 = vmatprep.subr.mxu0 0.0
    %98 = vmatpush1.msra.mxu0 0.0
    %99 = vmatprep.subr.mxu0 0.0
    %100 = vmatpush1.msra.mxu0 0.0
    %101 = vmatprep.subr.mxu0 0.0
    %102 = vmatpush1.msra.mxu0 0.0
    %103 = vmatprep.subr.mxu0 0.0
    %104 = vmatpush1.msra.mxu0 0.0
    %105 = vmatprep.subr.mxu0 0.0
    %106 = vmatpush1.msra.mxu0 0.0
    %107 = vmatprep.subr.mxu0 0.0
    %108 = vmatpush1.msra.mxu0 0.0
    %109 = vmatprep.subr.mxu0 0.0
    %110 = vmatpush1.msra.mxu0 0.0
    %111 = vmatprep.subr.mxu0 0.0
    %112 = vmatpush1.msra.mxu0 0.0
    %113 = vmatprep.subr.mxu0 %v82
    %114 = vmatpush1.msra.mxu0 %v79
    %115 = vmatprep.subr.mxu0 %v68
    %116 = vmatpush1.msra.mxu0 %v67
    %117 = vmatprep.subr.mxu0 %v65
    %118 = vmatpush1.msra.mxu0 %v64
    %119 = vmatprep.subr.mxu0 0.0
    %120 = vmatpush2.msra.mxu0 0.0
    %121 = vmatprep.subr.mxu0 0.0
    %122 = vmatpush2.msra.mxu0 0.0
    %123 = vmatprep.subr.mxu0 0.0
    %124 = vmatpush2.msra.mxu0 0.0
    %125 = vmatprep.subr.mxu0 0.0
    %126 = vmatpush2.msra.mxu0 0.0
    %127 = vmatprep.subr.mxu0 0.0
    %128 = vmatpush2.msra.mxu0 0.0
    %129 = vmatprep.subr.mxu0 0.0
    %130 = vmatpush2.msra.mxu0 0.0
    %131 = vmatprep.subr.mxu0 0.0
    %132 = vmatpush2.msra.mxu0 0.0
    %133 = vmatprep.subr.mxu0 0.0
    %134 = vmatpush2.msra.mxu0 0.0
    %135 = vmatprep.subr.mxu0 0.0
    %136 = vmatpush2.msra.mxu0 0.0
    %137 = vmatprep.subr.mxu0 0.0
    %138 = vmatpush2.msra.mxu0 0.0
    %139 = vmatprep.subr.mxu0 0.0
    %140 = vmatpush2.msra.mxu0 0.0
    %141 = vmatprep.subr.mxu0 0.0
    %142 = vmatpush2.msra.mxu0 0.0
    %143 = vmatprep.subr.mxu0 0.0
    %144 = vmatpush2.msra.mxu0 0.0
    %145 = vmatprep.subr.mxu0 0.0
    %146 = vmatpush2.msra.mxu0 0.0
    %147 = vmatprep.subr.mxu0 0.0
    %148 = vmatpush2.msra.mxu0 0.0
    %149 = vmatprep.subr.mxu0 0.0
    %150 = vmatpush2.msra.mxu0 0.0
    %151 = vmatprep.mubr.f32.mxu0 0.0
    %152 = vmatmul.mubr.f32.gmra.mxu0 %v75
    %v153 = vpop.f32.mrf.mxu0
    %v154 = vadd.f32 0.0, %v153
    %v155 = vpop.f32.mrf.mxu0
    %v156 = vadd.f32 0.0, %v155
    %157 = vdwg.mxu0
    %158 = vmatprep.subr.mxu0 0.0
    %159 = vmatpush1.msra.mxu0 0.0
    %160 = vmatprep.subr.mxu0 0.0
    %161 = vmatpush1.msra.mxu0 0.0
    %162 = vmatprep.subr.mxu0 0.0
    %163 = vmatpush1.msra.mxu0 0.0
    %164 = vmatprep.subr.mxu0 0.0
    %165 = vmatpush1.msra.mxu0 0.0
    %166 = vmatprep.subr.mxu0 0.0
    %167 = vmatpush1.msra.mxu0 0.0
    %168 = vmatprep.subr.mxu0 0.0
    %169 = vmatpush1.msra.mxu0 0.0
    %170 = vmatprep.subr.mxu0 0.0
    %171 = vmatpush1.msra.mxu0 0.0
    %172 = vmatprep.subr.mxu0 0.0
    %173 = vmatpush1.msra.mxu0 0.0
    %174 = vmatprep.subr.mxu0 0.0
    %175 = vmatpush1.msra.mxu0 0.0
    %176 = vmatprep.subr.mxu0 0.0
    %177 = vmatpush1.msra.mxu0 0.0
    %178 = vmatprep.subr.mxu0 0.0
    %179 = vmatpush1.msra.mxu0 0.0
    %180 = vmatprep.subr.mxu0 0.0
    %181 = vmatpush1.msra.mxu0 0.0
    %182 = vmatprep.subr.mxu0 0.0
    %183 = vmatpush1.msra.mxu0 0.0
    %184 = vmatprep.subr.mxu0 0.0
    %185 = vmatpush1.msra.mxu0 %v85
    %186 = vmatprep.subr.mxu0 0.0
    %187 = vmatpush1.msra.mxu0 %v69
    %188 = vmatprep.subr.mxu0 0.0
    %189 = vmatpush1.msra.mxu0 %v66
    %190 = vmatprep.subr.mxu0 0.0
    %191 = vmatpush2.msra.mxu0 0.0
    %192 = vmatprep.subr.mxu0 0.0
    %193 = vmatpush2.msra.mxu0 0.0
    %194 = vmatprep.subr.mxu0 0.0
    %195 = vmatpush2.msra.mxu0 0.0
    %196 = vmatprep.subr.mxu0 0.0
    %197 = vmatpush2.msra.mxu0 0.0
    %198 = vmatprep.subr.mxu0 0.0
    %199 = vmatpush2.msra.mxu0 0.0
    %200 = vmatprep.subr.mxu0 0.0
    %201 = vmatpush2.msra.mxu0 0.0
    %202 = vmatprep.subr.mxu0 0.0
    %203 = vmatpush2.msra.mxu0 0.0
    %204 = vmatprep.subr.mxu0 0.0
    %205 = vmatpush2.msra.mxu0 0.0
    %206 = vmatprep.subr.mxu0 0.0
    %207 = vmatpush2.msra.mxu0 0.0
    %208 = vmatprep.subr.mxu0 0.0
    %209 = vmatpush2.msra.mxu0 0.0
    %210 = vmatprep.subr.mxu0 0.0
    %211 = vmatpush2.msra.mxu0 0.0
    %212 = vmatprep.subr.mxu0 0.0
    %213 = vmatpush2.msra.mxu0 0.0
    %214 = vmatprep.subr.mxu0 0.0
    %215 = vmatpush2.msra.mxu0 0.0
    %216 = vmatprep.subr.mxu0 0.0
    %217 = vmatpush2.msra.mxu0 0.0
    %218 = vmatprep.subr.mxu0 0.0
    %219 = vmatpush2.msra.mxu0 0.0
    %220 = vmatprep.subr.mxu0 0.0
    %221 = vmatpush2.msra.mxu0 0.0
    %222 = vmatprep.mubr.f32.mxu0 0.0
    %223 = vmatmul.mubr.f32.gmra.mxu0 %v75
    %v224 = vpop.f32.mrf.mxu0
    %v225 = vadd.f32 0.0, %v224
    %v226 = vpop.f32.mrf.mxu0
    %227 = vdwg.mxu0
    %228 = vst [vmem:[#allocation2] sm:$0xff] %v154
    %229 = vst [vmem:[#allocation2 + $0x8] sm:$0xff] %v156
    %230 = vst [vmem:[#allocation2 + $0x10] sm:$0xff] %v225
    %v231 = vld [vmem:[#allocation9] sm:$0xff]
    %v232 = vld [vmem:[#allocation9 + $0x8] sm:$0xff]
    %v233 = vld [vmem:[#allocation9 + $0x10] sm:$0xff]
    %v234 = vld [vmem:[#allocation9 + $0x18] sm:$0xff]
    %v235 = vld [vmem:[#allocation9 + $0x20] sm:$0xff]
    %v236 = vld [vmem:[#allocation9 + $0x28] sm:$0xff]
    %v237 = vld [vmem:[#allocation9 + $0x30] sm:$0xff]
    %v238 = vld [vmem:[#allocation9 + $0x38] sm:$0xff]
    %v239 = vld [vmem:[#allocation9 + $0x40] sm:$0xff]
    %v240 = vld [vmem:[#allocation9 + $0x48] sm:$0xff]
    %v241 = vld [vmem:[#allocation9 + $0x50] sm:$0xff]
    %v242 = vld [vmem:[#allocation9 + $0x58] sm:$0xff]
    %v243 = vld [vmem:[#allocation9 + $0x60] sm:$0xff]
    %v244 = vld [vmem:[#allocation9 + $0x68] sm:$0xff]
    %v245 = vld [vmem:[#allocation9 + $0x70] sm:$0xff]
    %v246 = vld [vmem:[#allocation9 + $0x78] sm:$0xff]
    %v247 = vld [vmem:[#allocation9 + $0x80] sm:$0xff]
    %v248 = vld [vmem:[#allocation9 + $0x88] sm:$0xff]
    %v249 = vld [vmem:[#allocation9 + $0x90] sm:$0xff]
    %v250 = vld [vmem:[#allocation9 + $0x98] sm:$0xff]
    %v251 = vld [vmem:[#allocation9 + $0xa0] sm:$0xff]
    %v252 = vld [vmem:[#allocation9 + $0xa8] sm:$0xff]
    %v253 = vld [vmem:[#allocation9 + $0xb0] sm:$0xff]
    %v254 = vld [vmem:[#allocation9 + $0xb8] sm:$0xff]
    %v255 = vld [vmem:[#allocation9 + $0xc0] sm:$0xff]
    %v256 = vld [vmem:[#allocation9 + $0xc8] sm:$0xff]
    %v257 = vld [vmem:[#allocation9 + $0xd0] sm:$0xff]
    %v258 = vld [vmem:[#allocation9 + $0xd8] sm:$0xff]
    %v259 = vld [vmem:[#allocation9 + $0xe0] sm:$0xff]
    %v260 = vld [vmem:[#allocation9 + $0xe8] sm:$0xff]
    %v261 = vld [vmem:[#allocation9 + $0xf0] sm:$0xff]
    %v262 = vld [vmem:[#allocation9 + $0xf8] sm:$0xff]
    %v263 = vld [vmem:[#allocation9 + $0x100] sm:$0xff]
    %v264 = vld [vmem:[#allocation9 + $0x108] sm:$0xff]
    %v265 = vld [vmem:[#allocation9 + $0x110] sm:$0xff]
    %v266 = vld [vmem:[#allocation9 + $0x118] sm:$0xff]
    %v267 = vld [vmem:[#allocation9 + $0x120] sm:$0xff]
    %v268 = vld [vmem:[#allocation9 + $0x128] sm:$0xff]
    %v269 = vld [vmem:[#allocation9 + $0x130] sm:$0xff]
    %v270 = vld [vmem:[#allocation9 + $0x138] sm:$0xff]
    %v271 = vld [vmem:[#allocation9 + $0x140] sm:$0xff]
    %v272 = vld [vmem:[#allocation9 + $0x148] sm:$0xff]
    %v273 = vld [vmem:[#allocation9 + $0x150] sm:$0xff]
    %v274 = vld [vmem:[#allocation9 + $0x158] sm:$0xff]
    %v275 = vld [vmem:[#allocation9 + $0x160] sm:$0xff]
    %v276 = vld [vmem:[#allocation9 + $0x168] sm:$0xff]
    %v277 = vld [vmem:[#allocation9 + $0x170] sm:$0xff]
    %v278 = vld [vmem:[#allocation9 + $0x178] sm:$0xff]
    %v279 = vld [vmem:[%s4] sm:$0x1]
    %v280 = vld [vmem:[%s1] sm:$0x1]
    %v281 = vld [vmem:[#allocation2] ss:$8 sm:$0x7]
    %282 = vmatprep.subr.mxu0 %v277
    %283 = vmatpush1.msra.mxu0 %v276
    %284 = vmatprep.subr.mxu0 %v274
    %285 = vmatpush1.msra.mxu0 %v273
    %286 = vmatprep.subr.mxu0 %v271
    %287 = vmatpush1.msra.mxu0 %v270
    %288 = vmatprep.subr.mxu0 %v268
    %289 = vmatpush1.msra.mxu0 %v267
    %290 = vmatprep.subr.mxu0 %v265
    %291 = vmatpush1.msra.mxu0 %v264
    %292 = vmatprep.subr.mxu0 %v262
    %293 = vmatpush1.msra.mxu0 %v261
    %294 = vmatprep.subr.mxu0 %v259
    %295 = vmatpush1.msra.mxu0 %v258
    %296 = vmatprep.subr.mxu0 %v256
    %297 = vmatpush1.msra.mxu0 %v255
    %298 = vmatprep.subr.mxu0 %v253
    %299 = vmatpush1.msra.mxu0 %v252
    %300 = vmatprep.subr.mxu0 %v250
    %301 = vmatpush1.msra.mxu0 %v249
    %302 = vmatprep.subr.mxu0 %v247
    %303 = vmatpush1.msra.mxu0 %v246
    %304 = vmatprep.subr.mxu0 %v244
    %305 = vmatpush1.msra.mxu0 %v243
    %306 = vmatprep.subr.mxu0 %v241
    %307 = vmatpush1.msra.mxu0 %v240
    %308 = vmatprep.subr.mxu0 %v238
    %309 = vmatpush1.msra.mxu0 %v237
    %310 = vmatprep.subr.mxu0 %v235
    %311 = vmatpush1.msra.mxu0 %v234
    %312 = vmatprep.subr.mxu0 %v232
    %313 = vmatpush1.msra.mxu0 %v231
    %314 = vmatprep.subr.mxu0 0.0
    %315 = vmatpush2.msra.mxu0 0.0
    %316 = vmatprep.subr.mxu0 0.0
    %317 = vmatpush2.msra.mxu0 0.0
    %318 = vmatprep.subr.mxu0 0.0
    %319 = vmatpush2.msra.mxu0 0.0
    %320 = vmatprep.subr.mxu0 0.0
    %321 = vmatpush2.msra.mxu0 0.0
    %322 = vmatprep.subr.mxu0 0.0
    %323 = vmatpush2.msra.mxu0 0.0
    %324 = vmatprep.subr.mxu0 0.0
    %325 = vmatpush2.msra.mxu0 0.0
    %326 = vmatprep.subr.mxu0 0.0
    %327 = vmatpush2.msra.mxu0 0.0
    %328 = vmatprep.subr.mxu0 0.0
    %329 = vmatpush2.msra.mxu0 0.0
    %330 = vmatprep.subr.mxu0 0.0
    %331 = vmatpush2.msra.mxu0 0.0
    %332 = vmatprep.subr.mxu0 0.0
    %333 = vmatpush2.msra.mxu0 0.0
    %334 = vmatprep.subr.mxu0 0.0
    %335 = vmatpush2.msra.mxu0 0.0
    %336 = vmatprep.subr.mxu0 0.0
    %337 = vmatpush2.msra.mxu0 0.0
    %338 = vmatprep.subr.mxu0 0.0
    %339 = vmatpush2.msra.mxu0 0.0
    %340 = vmatprep.subr.mxu0 0.0
    %341 = vmatpush2.msra.mxu0 0.0
    %342 = vmatprep.subr.mxu0 0.0
    %343 = vmatpush2.msra.mxu0 0.0
    %344 = vmatprep.subr.mxu0 0.0
    %345 = vmatpush2.msra.mxu0 0.0
    %346 = vmatprep.mubr.f32.mxu0 0.0
    %347 = vmatmul.mubr.f32.gmra.mxu0 %v280
    %v348 = vpop.f32.mrf.mxu0
    %v349 = vadd.f32 0.0, %v348
    %v350 = vpop.f32.mrf.mxu0
    %v351 = vadd.f32 0.0, %v350
    %352 = vdwg.mxu0
    %353 = vmatprep.subr.mxu0 0.0
    %354 = vmatpush1.msra.mxu0 %v278
    %355 = vmatprep.subr.mxu0 0.0
    %356 = vmatpush1.msra.mxu0 %v275
    %357 = vmatprep.subr.mxu0 0.0
    %358 = vmatpush1.msra.mxu0 %v272
    %359 = vmatprep.subr.mxu0 0.0
    %360 = vmatpush1.msra.mxu0 %v269
    %361 = vmatprep.subr.mxu0 0.0
    %362 = vmatpush1.msra.mxu0 %v266
    %363 = vmatprep.subr.mxu0 0.0
    %364 = vmatpush1.msra.mxu0 %v263
    %365 = vmatprep.subr.mxu0 0.0
    %366 = vmatpush1.msra.mxu0 %v260
    %367 = vmatprep.subr.mxu0 0.0
    %368 = vmatpush1.msra.mxu0 %v257
    %369 = vmatprep.subr.mxu0 0.0
    %370 = vmatpush1.msra.mxu0 %v254
    %371 = vmatprep.subr.mxu0 0.0
    %372 = vmatpush1.msra.mxu0 %v251
    %373 = vmatprep.subr.mxu0 0.0
    %374 = vmatpush1.msra.mxu0 %v248
    %375 = vmatprep.subr.mxu0 0.0
    %376 = vmatpush1.msra.mxu0 %v245
    %377 = vmatprep.subr.mxu0 0.0
    %378 = vmatpush1.msra.mxu0 %v242
    %379 = vmatprep.subr.mxu0 0.0
    %380 = vmatpush1.msra.mxu0 %v239
    %381 = vmatprep.subr.mxu0 0.0
    %382 = vmatpush1.msra.mxu0 %v236
    %383 = vmatprep.subr.mxu0 0.0
    %384 = vmatpush1.msra.mxu0 %v233
    %385 = vmatprep.subr.mxu0 0.0
    %386 = vmatpush2.msra.mxu0 0.0
    %387 = vmatprep.subr.mxu0 0.0
    %388 = vmatpush2.msra.mxu0 0.0
    %389 = vmatprep.subr.mxu0 0.0
    %390 = vmatpush2.msra.mxu0 0.0
    %391 = vmatprep.subr.mxu0 0.0
    %392 = vmatpush2.msra.mxu0 0.0
    %393 = vmatprep.subr.mxu0 0.0
    %394 = vmatpush2.msra.mxu0 0.0
    %395 = vmatprep.subr.mxu0 0.0
    %396 = vmatpush2.msra.mxu0 0.0
    %397 = vmatprep.subr.mxu0 0.0
    %398 = vmatpush2.msra.mxu0 0.0
    %399 = vmatprep.subr.mxu0 0.0
    %400 = vmatpush2.msra.mxu0 0.0
    %401 = vmatprep.subr.mxu0 0.0
    %402 = vmatpush2.msra.mxu0 0.0
    %403 = vmatprep.subr.mxu0 0.0
    %404 = vmatpush2.msra.mxu0 0.0
    %405 = vmatprep.subr.mxu0 0.0
    %406 = vmatpush2.msra.mxu0 0.0
    %407 = vmatprep.subr.mxu0 0.0
    %408 = vmatpush2.msra.mxu0 0.0
    %409 = vmatprep.subr.mxu0 0.0
    %410 = vmatpush2.msra.mxu0 0.0
    %411 = vmatprep.subr.mxu0 0.0
    %412 = vmatpush2.msra.mxu0 0.0
    %413 = vmatprep.subr.mxu0 0.0
    %414 = vmatpush2.msra.mxu0 0.0
    %415 = vmatprep.subr.mxu0 0.0
    %416 = vmatpush2.msra.mxu0 0.0
    %417 = vmatprep.mubr.f32.mxu0 0.0
    %418 = vmatmul.mubr.f32.gmra.mxu0 %v280
    %v419 = vpop.f32.mrf.mxu0
    %v420 = vadd.f32 0.0, %v419
    %v421 = vpop.f32.mrf.mxu0
    %422 = vdwg.mxu0
    %v423 = vadd.f32 %v281, %v349
    %v424 = vxor.u32 %v423, 2147483648
    %v425 = vmul.f32 %v424, 1.442695
    %v426 = vpow.pop %v425
    %v427 = vadd.f32 %v426, 1.0
    %v428 = vrcp.pop %v427
    %v429 = vmul.f32 1.0, %v428
    %v431 = vrot.slane %v281, 1
    %v433 = vadd.f32 %v431, %v351
    %v434 = vxor.u32 %v433, 2147483648
    %v435 = vmul.f32 %v434, 1.442695
    %v436 = vpow.pop %v435
    %v437 = vadd.f32 %v436, 1.0
    %v438 = vrcp.pop %v437
    %v439 = vmul.f32 1.0, %v438
    %v440 = vadd.f32 %v420, %v279
    %v441 = vmul.f32 %v429, %v440
    %v442 = vrot.slane %v281, 2
    %v444 = vadd.f32 %v442, %v441
    %v445 = vtanh.pop %v444
    %v446 = vsub.f32 1.0, %v439
    %v447 = vmul.f32 %v446, %v445
    %v448 = vmul.f32 %v439, %v280
    %v449 = vadd.f32 %v447, %v448
    %450 = vst [vmem:[#allocation3] sm:$0x1] %v449
    %s451 = scalar_lea.vmem [#allocation2], 1
    %v452 = vld [vmem:[%s451] ss:$8 sm:$0x7]
    %453 = vmatprep.subr.mxu0 %v277
    %454 = vmatpush1.msra.mxu0 %v276
    %455 = vmatprep.subr.mxu0 %v274
    %456 = vmatpush1.msra.mxu0 %v273
    %457 = vmatprep.subr.mxu0 %v271
    %458 = vmatpush1.msra.mxu0 %v270
    %459 = vmatprep.subr.mxu0 %v268
    %460 = vmatpush1.msra.mxu0 %v267
    %461 = vmatprep.subr.mxu0 %v265
    %462 = vmatpush1.msra.mxu0 %v264
    %463 = vmatprep.subr.mxu0 %v262
    %464 = vmatpush1.msra.mxu0 %v261
    %465 = vmatprep.subr.mxu0 %v259
    %466 = vmatpush1.msra.mxu0 %v258
    %467 = vmatprep.subr.mxu0 %v256
    %468 = vmatpush1.msra.mxu0 %v255
    %469 = vmatprep.subr.mxu0 %v253
    %470 = vmatpush1.msra.mxu0 %v252
    %471 = vmatprep.subr.mxu0 %v250
    %472 = vmatpush1.msra.mxu0 %v249
    %473 = vmatprep.subr.mxu0 %v247
    %474 = vmatpush1.msra.mxu0 %v246
    %475 = vmatprep.subr.mxu0 %v244
    %476 = vmatpush1.msra.mxu0 %v243
    %477 = vmatprep.subr.mxu0 %v241
    %478 = vmatpush1.msra.mxu0 %v240
    %479 = vmatprep.subr.mxu0 %v238
    %480 = vmatpush1.msra.mxu0 %v237
    %481 = vmatprep.subr.mxu0 %v235
    %482 = vmatpush1.msra.mxu0 %v234
    %483 = vmatprep.subr.mxu0 %v232
    %484 = vmatpush1.msra.mxu0 %v231
    %485 = vmatprep.subr.mxu0 0.0
    %486 = vmatpush2.msra.mxu0 0.0
    %487 = vmatprep.subr.mxu0 0.0
    %488 = vmatpush2.msra.mxu0 0.0
    %489 = vmatprep.subr.mxu0 0.0
    %490 = vmatpush2.msra.mxu0 0.0
    %491 = vmatprep.subr.mxu0 0.0
    %492 = vmatpush2.msra.mxu0 0.0
    %493 = vmatprep.subr.mxu0 0.0
    %494 = vmatpush2.msra.mxu0 0.0
    %495 = vmatprep.subr.mxu0 0.0
    %496 = vmatpush2.msra.mxu0 0.0
    %497 = vmatprep.subr.mxu0 0.0
    %498 = vmatpush2.msra.mxu0 0.0
    %499 = vmatprep.subr.mxu0 0.0
    %500 = vmatpush2.msra.mxu0 0.0
    %501 = vmatprep.subr.mxu0 0.0
    %502 = vmatpush2.msra.mxu0 0.0
    %503 = vmatprep.subr.mxu0 0.0
    %504 = vmatpush2.msra.mxu0 0.0
    %505 = vmatprep.subr.mxu0 0.0
    %506 = vmatpush2.msra.mxu0 0.0
    %507 = vmatprep.subr.mxu0 0.0
    %508 = vmatpush2.msra.mxu0 0.0
    %509 = vmatprep.subr.mxu0 0.0
    %510 = vmatpush2.msra.mxu0 0.0
    %511 = vmatprep.subr.mxu0 0.0
    %512 = vmatpush2.msra.mxu0 0.0
    %513 = vmatprep.subr.mxu0 0.0
    %514 = vmatpush2.msra.mxu0 0.0
    %515 = vmatprep.subr.mxu0 0.0
    %516 = vmatpush2.msra.mxu0 0.0
    %517 = vmatprep.mubr.f32.mxu0 0.0
    %518 = vmatmul.mubr.f32.gmra.mxu0 %v449
    %v519 = vpop.f32.mrf.mxu0
    %v520 = vadd.f32 0.0, %v519
    %v521 = vpop.f32.mrf.mxu0
    %v522 = vadd.f32 0.0, %v521
    %523 = vdwg.mxu0
    %524 = vmatprep.subr.mxu0 0.0
    %525 = vmatpush1.msra.mxu0 %v278
    %526 = vmatprep.subr.mxu0 0.0
    %527 = vmatpush1.msra.mxu0 %v275
    %528 = vmatprep.subr.mxu0 0.0
    %529 = vmatpush1.msra.mxu0 %v272
    %530 = vmatprep.subr.mxu0 0.0
    %531 = vmatpush1.msra.mxu0 %v269
    %532 = vmatprep.subr.mxu0 0.0
    %533 = vmatpush1.msra.mxu0 %v266
    %534 = vmatprep.subr.mxu0 0.0
    %535 = vmatpush1.msra.mxu0 %v263
    %536 = vmatprep.subr.mxu0 0.0
    %537 = vmatpush1.msra.mxu0 %v260
    %538 = vmatprep.subr.mxu0 0.0
    %539 = vmatpush1.msra.mxu0 %v257
    %540 = vmatprep.subr.mxu0 0.0
    %541 = vmatpush1.msra.mxu0 %v254
    %542 = vmatprep.subr.mxu0 0.0
    %543 = vmatpush1.msra.mxu0 %v251
    %544 = vmatprep.subr.mxu0 0.0
    %545 = vmatpush1.msra.mxu0 %v248
    %546 = vmatprep.subr.mxu0 0.0
    %547 = vmatpush1.msra.mxu0 %v245
    %548 = vmatprep.subr.mxu0 0.0
    %549 = vmatpush1.msra.mxu0 %v242
    %550 = vmatprep.subr.mxu0 0.0
    %551 = vmatpush1.msra.mxu0 %v239
    %552 = vmatprep.subr.mxu0 0.0
    %553 = vmatpush1.msra.mxu0 %v236
    %554 = vmatprep.subr.mxu0 0.0
    %555 = vmatpush1.msra.mxu0 %v233
    %556 = vmatprep.subr.mxu0 0.0
    %557 = vmatpush2.msra.mxu0 0.0
    %558 = vmatprep.subr.mxu0 0.0
    %559 = vmatpush2.msra.mxu0 0.0
    %560 = vmatprep.subr.mxu0 0.0
    %561 = vmatpush2.msra.mxu0 0.0
    %562 = vmatprep.subr.mxu0 0.0
    %563 = vmatpush2.msra.mxu0 0.0
    %564 = vmatprep.subr.mxu0 0.0
    %565 = vmatpush2.msra.mxu0 0.0
    %566 = vmatprep.subr.mxu0 0.0
    %567 = vmatpush2.msra.mxu0 0.0
    %568 = vmatprep.subr.mxu0 0.0
    %569 = vmatpush2.msra.mxu0 0.0
    %570 = vmatprep.subr.mxu0 0.0
    %571 = vmatpush2.msra.mxu0 0.0
    %572 = vmatprep.subr.mxu0 0.0
    %573 = vmatpush2.msra.mxu0 0.0
    %574 = vmatprep.subr.mxu0 0.0
    %575 = vmatpush2.msra.mxu0 0.0
    %576 = vmatprep.subr.mxu0 0.0
    %577 = vmatpush2.msra.mxu0 0.0
    %578 = vmatprep.subr.mxu0 0.0
    %579 = vmatpush2.msra.mxu0 0.0
    %580 = vmatprep.subr.mxu0 0.0
    %581 = vmatpush2.msra.mxu0 0.0
    %582 = vmatprep.subr.mxu0 0.0
    %583 = vmatpush2.msra.mxu0 0.0
    %584 = vmatprep.subr.mxu0 0.0
    %585 = vmatpush2.msra.mxu0 0.0
    %586 = vmatprep.subr.mxu0 0.0
    %587 = vmatpush2.msra.mxu0 0.0
    %588 = vmatprep.mubr.f32.mxu0 0.0
    %589 = vmatmul.mubr.f32.gmra.mxu0 %v449
    %v590 = vpop.f32.mrf.mxu0
    %v591 = vadd.f32 0.0, %v590
    %v592 = vpop.f32.mrf.mxu0
    %593 = vdwg.mxu0
    %v594 = vadd.f32 %v452, %v520
    %v595 = vxor.u32 %v594, 2147483648
    %v596 = vmul.f32 %v595, 1.442695
    %v597 = vpow.pop %v596
    %v598 = vadd.f32 %v597, 1.0
    %v599 = vrcp.pop %v598
    %v600 = vmul.f32 1.0, %v599
    %v602 = vrot.slane %v452, 1
    %v604 = vadd.f32 %v602, %v522
    %v605 = vxor.u32 %v604, 2147483648
    %v606 = vmul.f32 %v605, 1.442695
    %v607 = vpow.pop %v606
    %v608 = vadd.f32 %v607, 1.0
    %v609 = vrcp.pop %v608
    %v610 = vmul.f32 1.0, %v609
    %v611 = vadd.f32 %v591, %v279
    %v612 = vmul.f32 %v600, %v611
    %v613 = vrot.slane %v452, 2
    %v615 = vadd.f32 %v613, %v612
    %v616 = vtanh.pop %v615
    %v617 = vsub.f32 1.0, %v610
    %v618 = vmul.f32 %v617, %v616
    %v619 = vmul.f32 %v610, %v449
    %v620 = vadd.f32 %v618, %v619
    %621 = vst [vmem:[#allocation3 + $0x1] sm:$0x1] %v620
    %s622 = scalar_lea.vmem [#allocation2], 2
    %v623 = vld [vmem:[%s622] ss:$8 sm:$0x7]
    %624 = vmatprep.subr.mxu0 %v277
    %625 = vmatpush1.msra.mxu0 %v276
    %626 = vmatprep.subr.mxu0 %v274
    %627 = vmatpush1.msra.mxu0 %v273
    %628 = vmatprep.subr.mxu0 %v271
    %629 = vmatpush1.msra.mxu0 %v270
    %630 = vmatprep.subr.mxu0 %v268
    %631 = vmatpush1.msra.mxu0 %v267
    %632 = vmatprep.subr.mxu0 %v265
    %633 = vmatpush1.msra.mxu0 %v264
    %634 = vmatprep.subr.mxu0 %v262
    %635 = vmatpush1.msra.mxu0 %v261
    %636 = vmatprep.subr.mxu0 %v259
    %637 = vmatpush1.msra.mxu0 %v258
    %638 = vmatprep.subr.mxu0 %v256
    %639 = vmatpush1.msra.mxu0 %v255
    %640 = vmatprep.subr.mxu0 %v253
    %641 = vmatpush1.msra.mxu0 %v252
    %642 = vmatprep.subr.mxu0 %v250
    %643 = vmatpush1.msra.mxu0 %v249
    %644 = vmatprep.subr.mxu0 %v247
    %645 = vmatpush1.msra.mxu0 %v246
    %646 = vmatprep.subr.mxu0 %v244
    %647 = vmatpush1.msra.mxu0 %v243
    %648 = vmatprep.subr.mxu0 %v241
    %649 = vmatpush1.msra.mxu0 %v240
    %650 = vmatprep.subr.mxu0 %v238
    %651 = vmatpush1.msra.mxu0 %v237
    %652 = vmatprep.subr.mxu0 %v235
    %653 = vmatpush1.msra.mxu0 %v234
    %654 = vmatprep.subr.mxu0 %v232
    %655 = vmatpush1.msra.mxu0 %v231
    %656 = vmatprep.subr.mxu0 0.0
    %657 = vmatpush2.msra.mxu0 0.0
    %658 = vmatprep.subr.mxu0 0.0
    %659 = vmatpush2.msra.mxu0 0.0
    %660 = vmatprep.subr.mxu0 0.0
    %661 = vmatpush2.msra.mxu0 0.0
    %662 = vmatprep.subr.mxu0 0.0
    %663 = vmatpush2.msra.mxu0 0.0
    %664 = vmatprep.subr.mxu0 0.0
    %665 = vmatpush2.msra.mxu0 0.0
    %666 = vmatprep.subr.mxu0 0.0
    %667 = vmatpush2.msra.mxu0 0.0
    %668 = vmatprep.subr.mxu0 0.0
    %669 = vmatpush2.msra.mxu0 0.0
    %670 = vmatprep.subr.mxu0 0.0
    %671 = vmatpush2.msra.mxu0 0.0
    %672 = vmatprep.subr.mxu0 0.0
    %673 = vmatpush2.msra.mxu0 0.0
    %674 = vmatprep.subr.mxu0 0.0
    %675 = vmatpush2.msra.mxu0 0.0
    %676 = vmatprep.subr.mxu0 0.0
    %677 = vmatpush2.msra.mxu0 0.0
    %678 = vmatprep.subr.mxu0 0.0
    %679 = vmatpush2.msra.mxu0 0.0
    %680 = vmatprep.subr.mxu0 0.0
    %681 = vmatpush2.msra.mxu0 0.0
    %682 = vmatprep.subr.mxu0 0.0
    %683 = vmatpush2.msra.mxu0 0.0
    %684 = vmatprep.subr.mxu0 0.0
    %685 = vmatpush2.msra.mxu0 0.0
    %686 = vmatprep.subr.mxu0 0.0
    %687 = vmatpush2.msra.mxu0 0.0
    %688 = vmatprep.mubr.f32.mxu0 0.0
    %689 = vmatmul.mubr.f32.gmra.mxu0 %v620
    %v690 = vpop.f32.mrf.mxu0
    %v691 = vadd.f32 0.0, %v690
    %v692 = vpop.f32.mrf.mxu0
    %v693 = vadd.f32 0.0, %v692
    %694 = vdwg.mxu0
    %695 = vmatprep.subr.mxu0 0.0
    %696 = vmatpush1.msra.mxu0 %v278
    %697 = vmatprep.subr.mxu0 0.0
    %698 = vmatpush1.msra.mxu0 %v275
    %699 = vmatprep.subr.mxu0 0.0
    %700 = vmatpush1.msra.mxu0 %v272
    %701 = vmatprep.subr.mxu0 0.0
    %702 = vmatpush1.msra.mxu0 %v269
    %703 = vmatprep.subr.mxu0 0.0
    %704 = vmatpush1.msra.mxu0 %v266
    %705 = vmatprep.subr.mxu0 0.0
    %706 = vmatpush1.msra.mxu0 %v263
    %707 = vmatprep.subr.mxu0 0.0
    %708 = vmatpush1.msra.mxu0 %v260
    %709 = vmatprep.subr.mxu0 0.0
    %710 = vmatpush1.msra.mxu0 %v257
    %711 = vmatprep.subr.mxu0 0.0
    %712 = vmatpush1.msra.mxu0 %v254
    %713 = vmatprep.subr.mxu0 0.0
    %714 = vmatpush1.msra.mxu0 %v251
    %715 = vmatprep.subr.mxu0 0.0
    %716 = vmatpush1.msra.mxu0 %v248
    %717 = vmatprep.subr.mxu0 0.0
    %718 = vmatpush1.msra.mxu0 %v245
    %719 = vmatprep.subr.mxu0 0.0
    %720 = vmatpush1.msra.mxu0 %v242
    %721 = vmatprep.subr.mxu0 0.0
    %722 = vmatpush1.msra.mxu0 %v239
    %723 = vmatprep.subr.mxu0 0.0
    %724 = vmatpush1.msra.mxu0 %v236
    %725 = vmatprep.subr.mxu0 0.0
    %726 = vmatpush1.msra.mxu0 %v233
    %727 = vmatprep.subr.mxu0 0.0
    %728 = vmatpush2.msra.mxu0 0.0
    %729 = vmatprep.subr.mxu0 0.0
    %730 = vmatpush2.msra.mxu0 0.0
    %731 = vmatprep.subr.mxu0 0.0
    %732 = vmatpush2.msra.mxu0 0.0
    %733 = vmatprep.subr.mxu0 0.0
    %734 = vmatpush2.msra.mxu0 0.0
    %735 = vmatprep.subr.mxu0 0.0
    %736 = vmatpush2.msra.mxu0 0.0
    %737 = vmatprep.subr.mxu0 0.0
    %738 = vmatpush2.msra.mxu0 0.0
    %739 = vmatprep.subr.mxu0 0.0
    %740 = vmatpush2.msra.mxu0 0.0
    %741 = vmatprep.subr.mxu0 0.0
    %742 = vmatpush2.msra.mxu0 0.0
    %743 = vmatprep.subr.mxu0 0.0
    %744 = vmatpush2.msra.mxu0 0.0
    %745 = vmatprep.subr.mxu0 0.0
    %746 = vmatpush2.msra.mxu0 0.0
    %747 = vmatprep.subr.mxu0 0.0
    %748 = vmatpush2.msra.mxu0 0.0
    %749 = vmatprep.subr.mxu0 0.0
    %750 = vmatpush2.msra.mxu0 0.0
    %751 = vmatprep.subr.mxu0 0.0
    %752 = vmatpush2.msra.mxu0 0.0
    %753 = vmatprep.subr.mxu0 0.0
    %754 = vmatpush2.msra.mxu0 0.0
    %755 = vmatprep.subr.mxu0 0.0
    %756 = vmatpush2.msra.mxu0 0.0
    %757 = vmatprep.subr.mxu0 0.0
    %758 = vmatpush2.msra.mxu0 0.0
    %759 = vmatprep.mubr.f32.mxu0 0.0
    %760 = vmatmul.mubr.f32.gmra.mxu0 %v620
    %v761 = vpop.f32.mrf.mxu0
    %v762 = vadd.f32 0.0, %v761
    %v763 = vpop.f32.mrf.mxu0
    %764 = vdwg.mxu0
    %v765 = vadd.f32 %v623, %v691
    %v766 = vxor.u32 %v765, 2147483648
    %v767 = vmul.f32 %v766, 1.442695
    %v768 = vpow.pop %v767
    %v769 = vadd.f32 %v768, 1.0
    %v770 = vrcp.pop %v769
    %v771 = vmul.f32 1.0, %v770
    %v773 = vrot.slane %v623, 1
    %v775 = vadd.f32 %v773, %v693
    %v776 = vxor.u32 %v775, 2147483648
    %v777 = vmul.f32 %v776, 1.442695
    %v778 = vpow.pop %v777
    %v779 = vadd.f32 %v778, 1.0
    %v780 = vrcp.pop %v779
    %v781 = vmul.f32 1.0, %v780
    %v782 = vadd.f32 %v762, %v279
    %v783 = vmul.f32 %v771, %v782
    %v784 = vrot.slane %v623, 2
    %v786 = vadd.f32 %v784, %v783
    %v787 = vtanh.pop %v786
    %v788 = vsub.f32 1.0, %v781
    %v789 = vmul.f32 %v788, %v787
    %v790 = vmul.f32 %v781, %v620
    %v791 = vadd.f32 %v789, %v790
    %792 = vst [vmem:[#allocation3 + $0x2] sm:$0x1] %v791
    %s793 = scalar_lea.vmem [#allocation2], 3
    %v794 = vld [vmem:[%s793] ss:$8 sm:$0x7]
    %795 = vmatprep.subr.mxu0 %v277
    %796 = vmatpush1.msra.mxu0 %v276
    %797 = vmatprep.subr.mxu0 %v274
    %798 = vmatpush1.msra.mxu0 %v273
    %799 = vmatprep.subr.mxu0 %v271
    %800 = vmatpush1.msra.mxu0 %v270
    %801 = vmatprep.subr.mxu0 %v268
    %802 = vmatpush1.msra.mxu0 %v267
    %803 = vmatprep.subr.mxu0 %v265
    %804 = vmatpush1.msra.mxu0 %v264
    %805 = vmatprep.subr.mxu0 %v262
    %806 = vmatpush1.msra.mxu0 %v261
    %807 = vmatprep.subr.mxu0 %v259
    %808 = vmatpush1.msra.mxu0 %v258
    %809 = vmatprep.subr.mxu0 %v256
    %810 = vmatpush1.msra.mxu0 %v255
    %811 = vmatprep.subr.mxu0 %v253
    %812 = vmatpush1.msra.mxu0 %v252
    %813 = vmatprep.subr.mxu0 %v250
    %814 = vmatpush1.msra.mxu0 %v249
    %815 = vmatprep.subr.mxu0 %v247
    %816 = vmatpush1.msra.mxu0 %v246
    %817 = vmatprep.subr.mxu0 %v244
    %818 = vmatpush1.msra.mxu0 %v243
    %819 = vmatprep.subr.mxu0 %v241
    %820 = vmatpush1.msra.mxu0 %v240
    %821 = vmatprep.subr.mxu0 %v238
    %822 = vmatpush1.msra.mxu0 %v237
    %823 = vmatprep.subr.mxu0 %v235
    %824 = vmatpush1.msra.mxu0 %v234
    %825 = vmatprep.subr.mxu0 %v232
    %826 = vmatpush1.msra.mxu0 %v231
    %827 = vmatprep.subr.mxu0 0.0
    %828 = vmatpush2.msra.mxu0 0.0
    %829 = vmatprep.subr.mxu0 0.0
    %830 = vmatpush2.msra.mxu0 0.0
    %831 = vmatprep.subr.mxu0 0.0
    %832 = vmatpush2.msra.mxu0 0.0
    %833 = vmatprep.subr.mxu0 0.0
    %834 = vmatpush2.msra.mxu0 0.0
    %835 = vmatprep.subr.mxu0 0.0
    %836 = vmatpush2.msra.mxu0 0.0
    %837 = vmatprep.subr.mxu0 0.0
    %838 = vmatpush2.msra.mxu0 0.0
    %839 = vmatprep.subr.mxu0 0.0
    %840 = vmatpush2.msra.mxu0 0.0
    %841 = vmatprep.subr.mxu0 0.0
    %842 = vmatpush2.msra.mxu0 0.0
    %843 = vmatprep.subr.mxu0 0.0
    %844 = vmatpush2.msra.mxu0 0.0
    %845 = vmatprep.subr.mxu0 0.0
    %846 = vmatpush2.msra.mxu0 0.0
    %847 = vmatprep.subr.mxu0 0.0
    %848 = vmatpush2.msra.mxu0 0.0
    %849 = vmatprep.subr.mxu0 0.0
    %850 = vmatpush2.msra.mxu0 0.0
    %851 = vmatprep.subr.mxu0 0.0
    %852 = vmatpush2.msra.mxu0 0.0
    %853 = vmatprep.subr.mxu0 0.0
    %854 = vmatpush2.msra.mxu0 0.0
    %855 = vmatprep.subr.mxu0 0.0
    %856 = vmatpush2.msra.mxu0 0.0
    %857 = vmatprep.subr.mxu0 0.0
    %858 = vmatpush2.msra.mxu0 0.0
    %859 = vmatprep.mubr.f32.mxu0 0.0
    %860 = vmatmul.mubr.f32.gmra.mxu0 %v791
    %v861 = vpop.f32.mrf.mxu0
    %v862 = vadd.f32 0.0, %v861
    %v863 = vpop.f32.mrf.mxu0
    %v864 = vadd.f32 0.0, %v863
    %865 = vdwg.mxu0
    %866 = vmatprep.subr.mxu0 0.0
    %867 = vmatpush1.msra.mxu0 %v278
    %868 = vmatprep.subr.mxu0 0.0
    %869 = vmatpush1.msra.mxu0 %v275
    %870 = vmatprep.subr.mxu0 0.0
    %871 = vmatpush1.msra.mxu0 %v272
    %872 = vmatprep.subr.mxu0 0.0
    %873 = vmatpush1.msra.mxu0 %v269
    %874 = vmatprep.subr.mxu0 0.0
    %875 = vmatpush1.msra.mxu0 %v266
    %876 = vmatprep.subr.mxu0 0.0
    %877 = vmatpush1.msra.mxu0 %v263
    %878 = vmatprep.subr.mxu0 0.0
    %879 = vmatpush1.msra.mxu0 %v260
    %880 = vmatprep.subr.mxu0 0.0
    %881 = vmatpush1.msra.mxu0 %v257
    %882 = vmatprep.subr.mxu0 0.0
    %883 = vmatpush1.msra.mxu0 %v254
    %884 = vmatprep.subr.mxu0 0.0
    %885 = vmatpush1.msra.mxu0 %v251
    %886 = vmatprep.subr.mxu0 0.0
    %887 = vmatpush1.msra.mxu0 %v248
    %888 = vmatprep.subr.mxu0 0.0
    %889 = vmatpush1.msra.mxu0 %v245
    %890 = vmatprep.subr.mxu0 0.0
    %891 = vmatpush1.msra.mxu0 %v242
    %892 = vmatprep.subr.mxu0 0.0
    %893 = vmatpush1.msra.mxu0 %v239
    %894 = vmatprep.subr.mxu0 0.0
    %895 = vmatpush1.msra.mxu0 %v236
    %896 = vmatprep.subr.mxu0 0.0
    %897 = vmatpush1.msra.mxu0 %v233
    %898 = vmatprep.subr.mxu0 0.0
    %899 = vmatpush2.msra.mxu0 0.0
    %900 = vmatprep.subr.mxu0 0.0
    %901 = vmatpush2.msra.mxu0 0.0
    %902 = vmatprep.subr.mxu0 0.0
    %903 = vmatpush2.msra.mxu0 0.0
    %904 = vmatprep.subr.mxu0 0.0
    %905 = vmatpush2.msra.mxu0 0.0
    %906 = vmatprep.subr.mxu0 0.0
    %907 = vmatpush2.msra.mxu0 0.0
    %908 = vmatprep.subr.mxu0 0.0
    %909 = vmatpush2.msra.mxu0 0.0
    %910 = vmatprep.subr.mxu0 0.0
    %911 = vmatpush2.msra.mxu0 0.0
    %912 = vmatprep.subr.mxu0 0.0
    %913 = vmatpush2.msra.mxu0 0.0
    %914 = vmatprep.subr.mxu0 0.0
    %915 = vmatpush2.msra.mxu0 0.0
    %916 = vmatprep.subr.mxu0 0.0
    %917 = vmatpush2.msra.mxu0 0.0
    %918 = vmatprep.subr.mxu0 0.0
    %919 = vmatpush2.msra.mxu0 0.0
    %920 = vmatprep.subr.mxu0 0.0
    %921 = vmatpush2.msra.mxu0 0.0
    %922 = vmatprep.subr.mxu0 0.0
    %923 = vmatpush2.msra.mxu0 0.0
    %924 = vmatprep.subr.mxu0 0.0
    %925 = vmatpush2.msra.mxu0 0.0
    %926 = vmatprep.subr.mxu0 0.0
    %927 = vmatpush2.msra.mxu0 0.0
    %928 = vmatprep.subr.mxu0 0.0
    %929 = vmatpush2.msra.mxu0 0.0
    %930 = vmatprep.mubr.f32.mxu0 0.0
    %931 = vmatmul.mubr.f32.gmra.mxu0 %v791
    %v932 = vpop.f32.mrf.mxu0
    %v933 = vadd.f32 0.0, %v932
    %v934 = vpop.f32.mrf.mxu0
    %935 = vdwg.mxu0
    %v936 = vadd.f32 %v794, %v862
    %v937 = vxor.u32 %v936, 2147483648
    %v938 = vmul.f32 %v937, 1.442695
    %v939 = vpow.pop %v938
    %v940 = vadd.f32 %v939, 1.0
    %v941 = vrcp.pop %v940
    %v942 = vmul.f32 1.0, %v941
    %v944 = vrot.slane %v794, 1
    %v946 = vadd.f32 %v944, %v864
    %v947 = vxor.u32 %v946, 2147483648
    %v948 = vmul.f32 %v947, 1.442695
    %v949 = vpow.pop %v948
    %v950 = vadd.f32 %v949, 1.0
    %v951 = vrcp.pop %v950
    %v952 = vmul.f32 1.0, %v951
    %v953 = vadd.f32 %v933, %v279
    %v954 = vmul.f32 %v942, %v953
    %v955 = vrot.slane %v794, 2
    %v957 = vadd.f32 %v955, %v954
    %v958 = vtanh.pop %v957
    %v959 = vsub.f32 1.0, %v952
    %v960 = vmul.f32 %v959, %v958
    %v961 = vmul.f32 %v952, %v791
    %v962 = vadd.f32 %v960, %v961
    %963 = vst [vmem:[#allocation3 + $0x3] sm:$0x1] %v962
    %s964 = scalar_lea.vmem [#allocation2], 4
    %v965 = vld [vmem:[%s964] ss:$8 sm:$0x7]
    %966 = vmatprep.subr.mxu0 %v277
    %967 = vmatpush1.msra.mxu0 %v276
    %968 = vmatprep.subr.mxu0 %v274
    %969 = vmatpush1.msra.mxu0 %v273
    %970 = vmatprep.subr.mxu0 %v271
    %971 = vmatpush1.msra.mxu0 %v270
    %972 = vmatprep.subr.mxu0 %v268
    %973 = vmatpush1.msra.mxu0 %v267
    %974 = vmatprep.subr.mxu0 %v265
    %975 = vmatpush1.msra.mxu0 %v264
    %976 = vmatprep.subr.mxu0 %v262
    %977 = vmatpush1.msra.mxu0 %v261
    %978 = vmatprep.subr.mxu0 %v259
    %979 = vmatpush1.msra.mxu0 %v258
    %980 = vmatprep.subr.mxu0 %v256
    %981 = vmatpush1.msra.mxu0 %v255
    %982 = vmatprep.subr.mxu0 %v253
    %983 = vmatpush1.msra.mxu0 %v252
    %984 = vmatprep.subr.mxu0 %v250
    %985 = vmatpush1.msra.mxu0 %v249
    %986 = vmatprep.subr.mxu0 %v247
    %987 = vmatpush1.msra.mxu0 %v246
    %988 = vmatprep.subr.mxu0 %v244
    %989 = vmatpush1.msra.mxu0 %v243
    %990 = vmatprep.subr.mxu0 %v241
    %991 = vmatpush1.msra.mxu0 %v240
    %992 = vmatprep.subr.mxu0 %v238
    %993 = vmatpush1.msra.mxu0 %v237
    %994 = vmatprep.subr.mxu0 %v235
    %995 = vmatpush1.msra.mxu0 %v234
    %996 = vmatprep.subr.mxu0 %v232
    %997 = vmatpush1.msra.mxu0 %v231
    %998 = vmatprep.subr.mxu0 0.0
    %999 = vmatpush2.msra.mxu0 0.0
    %1000 = vmatprep.subr.mxu0 0.0
    %1001 = vmatpush2.msra.mxu0 0.0
    %1002 = vmatprep.subr.mxu0 0.0
    %1003 = vmatpush2.msra.mxu0 0.0
    %1004 = vmatprep.subr.mxu0 0.0
    %1005 = vmatpush2.msra.mxu0 0.0
    %1006 = vmatprep.subr.mxu0 0.0
    %1007 = vmatpush2.msra.mxu0 0.0
    %1008 = vmatprep.subr.mxu0 0.0
    %1009 = vmatpush2.msra.mxu0 0.0
    %1010 = vmatprep.subr.mxu0 0.0
    %1011 = vmatpush2.msra.mxu0 0.0
    %1012 = vmatprep.subr.mxu0 0.0
    %1013 = vmatpush2.msra.mxu0 0.0
    %1014 = vmatprep.subr.mxu0 0.0
    %1015 = vmatpush2.msra.mxu0 0.0
    %1016 = vmatprep.subr.mxu0 0.0
    %1017 = vmatpush2.msra.mxu0 0.0
    %1018 = vmatprep.subr.mxu0 0.0
    %1019 = vmatpush2.msra.mxu0 0.0
    %1020 = vmatprep.subr.mxu0 0.0
    %1021 = vmatpush2.msra.mxu0 0.0
    %1022 = vmatprep.subr.mxu0 0.0
    %1023 = vmatpush2.msra.mxu0 0.0
    %1024 = vmatprep.subr.mxu0 0.0
    %1025 = vmatpush2.msra.mxu0 0.0
    %1026 = vmatprep.subr.mxu0 0.0
    %1027 = vmatpush2.msra.mxu0 0.0
    %1028 = vmatprep.subr.mxu0 0.0
    %1029 = vmatpush2.msra.mxu0 0.0
    %1030 = vmatprep.mubr.f32.mxu0 0.0
    %1031 = vmatmul.mubr.f32.gmra.mxu0 %v962
    %v1032 = vpop.f32.mrf.mxu0
    %v1033 = vadd.f32 0.0, %v1032
    %v1034 = vpop.f32.mrf.mxu0
    %v1035 = vadd.f32 0.0, %v1034
    %1036 = vdwg.mxu0
    %1037 = vmatprep.subr.mxu0 0.0
    %1038 = vmatpush1.msra.mxu0 %v278
    %1039 = vmatprep.subr.mxu0 0.0
    %1040 = vmatpush1.msra.mxu0 %v275
    %1041 = vmatprep.subr.mxu0 0.0
    %1042 = vmatpush1.msra.mxu0 %v272
    %1043 = vmatprep.subr.mxu0 0.0
    %1044 = vmatpush1.msra.mxu0 %v269
    %1045 = vmatprep.subr.mxu0 0.0
    %1046 = vmatpush1.msra.mxu0 %v266
    %1047 = vmatprep.subr.mxu0 0.0
    %1048 = vmatpush1.msra.mxu0 %v263
    %1049 = vmatprep.subr.mxu0 0.0
    %1050 = vmatpush1.msra.mxu0 %v260
    %1051 = vmatprep.subr.mxu0 0.0
    %1052 = vmatpush1.msra.mxu0 %v257
    %1053 = vmatprep.subr.mxu0 0.0
    %1054 = vmatpush1.msra.mxu0 %v254
    %1055 = vmatprep.subr.mxu0 0.0
    %1056 = vmatpush1.msra.mxu0 %v251
    %1057 = vmatprep.subr.mxu0 0.0
    %1058 = vmatpush1.msra.mxu0 %v248
    %1059 = vmatprep.subr.mxu0 0.0
    %1060 = vmatpush1.msra.mxu0 %v245
    %1061 = vmatprep.subr.mxu0 0.0
    %1062 = vmatpush1.msra.mxu0 %v242
    %1063 = vmatprep.subr.mxu0 0.0
    %1064 = vmatpush1.msra.mxu0 %v239
    %1065 = vmatprep.subr.mxu0 0.0
    %1066 = vmatpush1.msra.mxu0 %v236
    %1067 = vmatprep.subr.mxu0 0.0
    %1068 = vmatpush1.msra.mxu0 %v233
    %1069 = vmatprep.subr.mxu0 0.0
    %1070 = vmatpush2.msra.mxu0 0.0
    %1071 = vmatprep.subr.mxu0 0.0
    %1072 = vmatpush2.msra.mxu0 0.0
    %1073 = vmatprep.subr.mxu0 0.0
    %1074 = vmatpush2.msra.mxu0 0.0
    %1075 = vmatprep.subr.mxu0 0.0
    %1076 = vmatpush2.msra.mxu0 0.0
    %1077 = vmatprep.subr.mxu0 0.0
    %1078 = vmatpush2.msra.mxu0 0.0
    %1079 = vmatprep.subr.mxu0 0.0
    %1080 = vmatpush2.msra.mxu0 0.0
    %1081 = vmatprep.subr.mxu0 0.0
    %1082 = vmatpush2.msra.mxu0 0.0
    %1083 = vmatprep.subr.mxu0 0.0
    %1084 = vmatpush2.msra.mxu0 0.0
    %1085 = vmatprep.subr.mxu0 0.0
    %1086 = vmatpush2.msra.mxu0 0.0
    %1087 = vmatprep.subr.mxu0 0.0
    %1088 = vmatpush2.msra.mxu0 0.0
    %1089 = vmatprep.subr.mxu0 0.0
    %1090 = vmatpush2.msra.mxu0 0.0
    %1091 = vmatprep.subr.mxu0 0.0
    %1092 = vmatpush2.msra.mxu0 0.0
    %1093 = vmatprep.subr.mxu0 0.0
    %1094 = vmatpush2.msra.mxu0 0.0
    %1095 = vmatprep.subr.mxu0 0.0
    %1096 = vmatpush2.msra.mxu0 0.0
    %1097 = vmatprep.subr.mxu0 0.0
    %1098 = vmatpush2.msra.mxu0 0.0
    %1099 = vmatprep.subr.mxu0 0.0
    %1100 = vmatpush2.msra.mxu0 0.0
    %1101 = vmatprep.mubr.f32.mxu0 0.0
    %1102 = vmatmul.mubr.f32.gmra.mxu0 %v962
    %v1103 = vpop.f32.mrf.mxu0
    %v1104 = vadd.f32 0.0, %v1103
    %v1105 = vpop.f32.mrf.mxu0
    %1106 = vdwg.mxu0
    %v1107 = vadd.f32 %v965, %v1033
    %v1108 = vxor.u32 %v1107, 2147483648
    %v1109 = vmul.f32 %v1108, 1.442695
    %v1110 = vpow.pop %v1109
    %v1111 = vadd.f32 %v1110, 1.0
    %v1112 = vrcp.pop %v1111
    %v1113 = vmul.f32 1.0, %v1112
    %v1115 = vrot.slane %v965, 1
    %v1117 = vadd.f32 %v1115, %v1035
    %v1118 = vxor.u32 %v1117, 2147483648
    %v1119 = vmul.f32 %v1118, 1.442695
    %v1120 = vpow.pop %v1119
    %v1121 = vadd.f32 %v1120, 1.0
    %v1122 = vrcp.pop %v1121
    %v1123 = vmul.f32 1.0, %v1122
    %v1124 = vadd.f32 %v1104, %v279
    %v1125 = vmul.f32 %v1113, %v1124
    %v1126 = vrot.slane %v965, 2
    %v1128 = vadd.f32 %v1126, %v1125
    %v1129 = vtanh.pop %v1128
    %v1130 = vsub.f32 1.0, %v1123
    %v1131 = vmul.f32 %v1130, %v1129
    %v1132 = vmul.f32 %v1123, %v962
    %v1133 = vadd.f32 %v1131, %v1132
    %1134 = vst [vmem:[#allocation3 + $0x4] sm:$0x1] %v1133
    %s1135 = scalar_lea.vmem [#allocation2], 5
    %v1136 = vld [vmem:[%s1135] ss:$8 sm:$0x7]
    %1137 = vmatprep.subr.mxu0 %v277
    %1138 = vmatpush1.msra.mxu0 %v276
    %1139 = vmatprep.subr.mxu0 %v274
    %1140 = vmatpush1.msra.mxu0 %v273
    %1141 = vmatprep.subr.mxu0 %v271
    %1142 = vmatpush1.msra.mxu0 %v270
    %1143 = vmatprep.subr.mxu0 %v268
    %1144 = vmatpush1.msra.mxu0 %v267
    %1145 = vmatprep.subr.mxu0 %v265
    %1146 = vmatpush1.msra.mxu0 %v264
    %1147 = vmatprep.subr.mxu0 %v262
    %1148 = vmatpush1.msra.mxu0 %v261
    %1149 = vmatprep.subr.mxu0 %v259
    %1150 = vmatpush1.msra.mxu0 %v258
    %1151 = vmatprep.subr.mxu0 %v256
    %1152 = vmatpush1.msra.mxu0 %v255
    %1153 = vmatprep.subr.mxu0 %v253
    %1154 = vmatpush1.msra.mxu0 %v252
    %1155 = vmatprep.subr.mxu0 %v250
    %1156 = vmatpush1.msra.mxu0 %v249
    %1157 = vmatprep.subr.mxu0 %v247
    %1158 = vmatpush1.msra.mxu0 %v246
    %1159 = vmatprep.subr.mxu0 %v244
    %1160 = vmatpush1.msra.mxu0 %v243
    %1161 = vmatprep.subr.mxu0 %v241
    %1162 = vmatpush1.msra.mxu0 %v240
    %1163 = vmatprep.subr.mxu0 %v238
    %1164 = vmatpush1.msra.mxu0 %v237
    %1165 = vmatprep.subr.mxu0 %v235
    %1166 = vmatpush1.msra.mxu0 %v234
    %1167 = vmatprep.subr.mxu0 %v232
    %1168 = vmatpush1.msra.mxu0 %v231
    %1169 = vmatprep.subr.mxu0 0.0
    %1170 = vmatpush2.msra.mxu0 0.0
    %1171 = vmatprep.subr.mxu0 0.0
    %1172 = vmatpush2.msra.mxu0 0.0
    %1173 = vmatprep.subr.mxu0 0.0
    %1174 = vmatpush2.msra.mxu0 0.0
    %1175 = vmatprep.subr.mxu0 0.0
    %1176 = vmatpush2.msra.mxu0 0.0
    %1177 = vmatprep.subr.mxu0 0.0
    %1178 = vmatpush2.msra.mxu0 0.0
    %1179 = vmatprep.subr.mxu0 0.0
    %1180 = vmatpush2.msra.mxu0 0.0
    %1181 = vmatprep.subr.mxu0 0.0
    %1182 = vmatpush2.msra.mxu0 0.0
    %1183 = vmatprep.subr.mxu0 0.0
    %1184 = vmatpush2.msra.mxu0 0.0
    %1185 = vmatprep.subr.mxu0 0.0
    %1186 = vmatpush2.msra.mxu0 0.0
    %1187 = vmatprep.subr.mxu0 0.0
    %1188 = vmatpush2.msra.mxu0 0.0
    %1189 = vmatprep.subr.mxu0 0.0
    %1190 = vmatpush2.msra.mxu0 0.0
    %1191 = vmatprep.subr.mxu0 0.0
    %1192 = vmatpush2.msra.mxu0 0.0
    %1193 = vmatprep.subr.mxu0 0.0
    %1194 = vmatpush2.msra.mxu0 0.0
    %1195 = vmatprep.subr.mxu0 0.0
    %1196 = vmatpush2.msra.mxu0 0.0
    %1197 = vmatprep.subr.mxu0 0.0
    %1198 = vmatpush2.msra.mxu0 0.0
    %1199 = vmatprep.subr.mxu0 0.0
    %1200 = vmatpush2.msra.mxu0 0.0
    %1201 = vmatprep.mubr.f32.mxu0 0.0
    %1202 = vmatmul.mubr.f32.gmra.mxu0 %v1133
    %v1203 = vpop.f32.mrf.mxu0
    %v1204 = vadd.f32 0.0, %v1203
    %v1205 = vpop.f32.mrf.mxu0
    %v1206 = vadd.f32 0.0, %v1205
    %1207 = vdwg.mxu0
    %1208 = vmatprep.subr.mxu0 0.0
    %1209 = vmatpush1.msra.mxu0 %v278
    %1210 = vmatprep.subr.mxu0 0.0
    %1211 = vmatpush1.msra.mxu0 %v275
    %1212 = vmatprep.subr.mxu0 0.0
    %1213 = vmatpush1.msra.mxu0 %v272
    %1214 = vmatprep.subr.mxu0 0.0
    %1215 = vmatpush1.msra.mxu0 %v269
    %1216 = vmatprep.subr.mxu0 0.0
    %1217 = vmatpush1.msra.mxu0 %v266
    %1218 = vmatprep.subr.mxu0 0.0
    %1219 = vmatpush1.msra.mxu0 %v263
    %1220 = vmatprep.subr.mxu0 0.0
    %1221 = vmatpush1.msra.mxu0 %v260
    %1222 = vmatprep.subr.mxu0 0.0
    %1223 = vmatpush1.msra.mxu0 %v257
    %1224 = vmatprep.subr.mxu0 0.0
    %1225 = vmatpush1.msra.mxu0 %v254
    %1226 = vmatprep.subr.mxu0 0.0
    %1227 = vmatpush1.msra.mxu0 %v251
    %1228 = vmatprep.subr.mxu0 0.0
    %1229 = vmatpush1.msra.mxu0 %v248
    %1230 = vmatprep.subr.mxu0 0.0
    %1231 = vmatpush1.msra.mxu0 %v245
    %1232 = vmatprep.subr.mxu0 0.0
    %1233 = vmatpush1.msra.mxu0 %v242
    %1234 = vmatprep.subr.mxu0 0.0
    %1235 = vmatpush1.msra.mxu0 %v239
    %1236 = vmatprep.subr.mxu0 0.0
    %1237 = vmatpush1.msra.mxu0 %v236
    %1238 = vmatprep.subr.mxu0 0.0
    %1239 = vmatpush1.msra.mxu0 %v233
    %1240 = vmatprep.subr.mxu0 0.0
    %1241 = vmatpush2.msra.mxu0 0.0
    %1242 = vmatprep.subr.mxu0 0.0
    %1243 = vmatpush2.msra.mxu0 0.0
    %1244 = vmatprep.subr.mxu0 0.0
    %1245 = vmatpush2.msra.mxu0 0.0
    %1246 = vmatprep.subr.mxu0 0.0
    %1247 = vmatpush2.msra.mxu0 0.0
    %1248 = vmatprep.subr.mxu0 0.0
    %1249 = vmatpush2.msra.mxu0 0.0
    %1250 = vmatprep.subr.mxu0 0.0
    %1251 = vmatpush2.msra.mxu0 0.0
    %1252 = vmatprep.subr.mxu0 0.0
    %1253 = vmatpush2.msra.mxu0 0.0
    %1254 = vmatprep.subr.mxu0 0.0
    %1255 = vmatpush2.msra.mxu0 0.0
    %1256 = vmatprep.subr.mxu0 0.0
    %1257 = vmatpush2.msra.mxu0 0.0
    %1258 = vmatprep.subr.mxu0 0.0
    %1259 = vmatpush2.msra.mxu0 0.0
    %1260 = vmatprep.subr.mxu0 0.0
    %1261 = vmatpush2.msra.mxu0 0.0
    %1262 = vmatprep.subr.mxu0 0.0
    %1263 = vmatpush2.msra.mxu0 0.0
    %1264 = vmatprep.subr.mxu0 0.0
    %1265 = vmatpush2.msra.mxu0 0.0
    %1266 = vmatprep.subr.mxu0 0.0
    %1267 = vmatpush2.msra.mxu0 0.0
    %1268 = vmatprep.subr.mxu0 0.0
    %1269 = vmatpush2.msra.mxu0 0.0
    %1270 = vmatprep.subr.mxu0 0.0
    %1271 = vmatpush2.msra.mxu0 0.0
    %1272 = vmatprep.mubr.f32.mxu0 0.0
    %1273 = vmatmul.mubr.f32.gmra.mxu0 %v1133
    %v1274 = vpop.f32.mrf.mxu0
    %v1275 = vadd.f32 0.0, %v1274
    %v1276 = vpop.f32.mrf.mxu0
    %1277 = vdwg.mxu0
    %v1278 = vadd.f32 %v1136, %v1204
    %v1279 = vxor.u32 %v1278, 2147483648
    %v1280 = vmul.f32 %v1279, 1.442695
    %v1281 = vpow.pop %v1280
    %v1282 = vadd.f32 %v1281, 1.0
    %v1283 = vrcp.pop %v1282
    %v1284 = vmul.f32 1.0, %v1283
    %v1286 = vrot.slane %v1136, 1
    %v1288 = vadd.f32 %v1286, %v1206
    %v1289 = vxor.u32 %v1288, 2147483648
    %v1290 = vmul.f32 %v1289, 1.442695
    %v1291 = vpow.pop %v1290
    %v1292 = vadd.f32 %v1291, 1.0
    %v1293 = vrcp.pop %v1292
    %v1294 = vmul.f32 1.0, %v1293
    %v1295 = vadd.f32 %v1275, %v279
    %v1296 = vmul.f32 %v1284, %v1295
    %v1297 = vrot.slane %v1136, 2
    %v1299 = vadd.f32 %v1297, %v1296
    %v1300 = vtanh.pop %v1299
    %v1301 = vsub.f32 1.0, %v1294
    %v1302 = vmul.f32 %v1301, %v1300
    %v1303 = vmul.f32 %v1294, %v1133
    %v1304 = vadd.f32 %v1302, %v1303
    %1305 = vst [vmem:[#allocation3 + $0x5] sm:$0x1] %v1304
    %s1306 = scalar_lea.vmem [#allocation2], 6
    %v1307 = vld [vmem:[%s1306] ss:$8 sm:$0x7]
    %1308 = vmatprep.subr.mxu0 %v277
    %1309 = vmatpush1.msra.mxu0 %v276
    %1310 = vmatprep.subr.mxu0 %v274
    %1311 = vmatpush1.msra.mxu0 %v273
    %1312 = vmatprep.subr.mxu0 %v271
    %1313 = vmatpush1.msra.mxu0 %v270
    %1314 = vmatprep.subr.mxu0 %v268
    %1315 = vmatpush1.msra.mxu0 %v267
    %1316 = vmatprep.subr.mxu0 %v265
    %1317 = vmatpush1.msra.mxu0 %v264
    %1318 = vmatprep.subr.mxu0 %v262
    %1319 = vmatpush1.msra.mxu0 %v261
    %1320 = vmatprep.subr.mxu0 %v259
    %1321 = vmatpush1.msra.mxu0 %v258
    %1322 = vmatprep.subr.mxu0 %v256
    %1323 = vmatpush1.msra.mxu0 %v255
    %1324 = vmatprep.subr.mxu0 %v253
    %1325 = vmatpush1.msra.mxu0 %v252
    %1326 = vmatprep.subr.mxu0 %v250
    %1327 = vmatpush1.msra.mxu0 %v249
    %1328 = vmatprep.subr.mxu0 %v247
    %1329 = vmatpush1.msra.mxu0 %v246
    %1330 = vmatprep.subr.mxu0 %v244
    %1331 = vmatpush1.msra.mxu0 %v243
    %1332 = vmatprep.subr.mxu0 %v241
    %1333 = vmatpush1.msra.mxu0 %v240
    %1334 = vmatprep.subr.mxu0 %v238
    %1335 = vmatpush1.msra.mxu0 %v237
    %1336 = vmatprep.subr.mxu0 %v235
    %1337 = vmatpush1.msra.mxu0 %v234
    %1338 = vmatprep.subr.mxu0 %v232
    %1339 = vmatpush1.msra.mxu0 %v231
    %1340 = vmatprep.subr.mxu0 0.0
    %1341 = vmatpush2.msra.mxu0 0.0
    %1342 = vmatprep.subr.mxu0 0.0
    %1343 = vmatpush2.msra.mxu0 0.0
    %1344 = vmatprep.subr.mxu0 0.0
    %1345 = vmatpush2.msra.mxu0 0.0
    %1346 = vmatprep.subr.mxu0 0.0
    %1347 = vmatpush2.msra.mxu0 0.0
    %1348 = vmatprep.subr.mxu0 0.0
    %1349 = vmatpush2.msra.mxu0 0.0
    %1350 = vmatprep.subr.mxu0 0.0
    %1351 = vmatpush2.msra.mxu0 0.0
    %1352 = vmatprep.subr.mxu0 0.0
    %1353 = vmatpush2.msra.mxu0 0.0
    %1354 = vmatprep.subr.mxu0 0.0
    %1355 = vmatpush2.msra.mxu0 0.0
    %1356 = vmatprep.subr.mxu0 0.0
    %1357 = vmatpush2.msra.mxu0 0.0
    %1358 = vmatprep.subr.mxu0 0.0
    %1359 = vmatpush2.msra.mxu0 0.0
    %1360 = vmatprep.subr.mxu0 0.0
    %1361 = vmatpush2.msra.mxu0 0.0
    %1362 = vmatprep.subr.mxu0 0.0
    %1363 = vmatpush2.msra.mxu0 0.0
    %1364 = vmatprep.subr.mxu0 0.0
    %1365 = vmatpush2.msra.mxu0 0.0
    %1366 = vmatprep.subr.mxu0 0.0
    %1367 = vmatpush2.msra.mxu0 0.0
    %1368 = vmatprep.subr.mxu0 0.0
    %1369 = vmatpush2.msra.mxu0 0.0
    %1370 = vmatprep.subr.mxu0 0.0
    %1371 = vmatpush2.msra.mxu0 0.0
    %1372 = vmatprep.mubr.f32.mxu0 0.0
    %1373 = vmatmul.mubr.f32.gmra.mxu0 %v1304
    %v1374 = vpop.f32.mrf.mxu0
    %v1375 = vadd.f32 0.0, %v1374
    %v1376 = vpop.f32.mrf.mxu0
    %v1377 = vadd.f32 0.0, %v1376
    %1378 = vdwg.mxu0
    %1379 = vmatprep.subr.mxu0 0.0
    %1380 = vmatpush1.msra.mxu0 %v278
    %1381 = vmatprep.subr.mxu0 0.0
    %1382 = vmatpush1.msra.mxu0 %v275
    %1383 = vmatprep.subr.mxu0 0.0
    %1384 = vmatpush1.msra.mxu0 %v272
    %1385 = vmatprep.subr.mxu0 0.0
    %1386 = vmatpush1.msra.mxu0 %v269
    %1387 = vmatprep.subr.mxu0 0.0
    %1388 = vmatpush1.msra.mxu0 %v266
    %1389 = vmatprep.subr.mxu0 0.0
    %1390 = vmatpush1.msra.mxu0 %v263
    %1391 = vmatprep.subr.mxu0 0.0
    %1392 = vmatpush1.msra.mxu0 %v260
    %1393 = vmatprep.subr.mxu0 0.0
    %1394 = vmatpush1.msra.mxu0 %v257
    %1395 = vmatprep.subr.mxu0 0.0
    %1396 = vmatpush1.msra.mxu0 %v254
    %1397 = vmatprep.subr.mxu0 0.0
    %1398 = vmatpush1.msra.mxu0 %v251
    %1399 = vmatprep.subr.mxu0 0.0
    %1400 = vmatpush1.msra.mxu0 %v248
    %1401 = vmatprep.subr.mxu0 0.0
    %1402 = vmatpush1.msra.mxu0 %v245
    %1403 = vmatprep.subr.mxu0 0.0
    %1404 = vmatpush1.msra.mxu0 %v242
    %1405 = vmatprep.subr.mxu0 0.0
    %1406 = vmatpush1.msra.mxu0 %v239
    %1407 = vmatprep.subr.mxu0 0.0
    %1408 = vmatpush1.msra.mxu0 %v236
    %1409 = vmatprep.subr.mxu0 0.0
    %1410 = vmatpush1.msra.mxu0 %v233
    %1411 = vmatprep.subr.mxu0 0.0
    %1412 = vmatpush2.msra.mxu0 0.0
    %1413 = vmatprep.subr.mxu0 0.0
    %1414 = vmatpush2.msra.mxu0 0.0
    %1415 = vmatprep.subr.mxu0 0.0
    %1416 = vmatpush2.msra.mxu0 0.0
    %1417 = vmatprep.subr.mxu0 0.0
    %1418 = vmatpush2.msra.mxu0 0.0
    %1419 = vmatprep.subr.mxu0 0.0
    %1420 = vmatpush2.msra.mxu0 0.0
    %1421 = vmatprep.subr.mxu0 0.0
    %1422 = vmatpush2.msra.mxu0 0.0
    %1423 = vmatprep.subr.mxu0 0.0
    %1424 = vmatpush2.msra.mxu0 0.0
    %1425 = vmatprep.subr.mxu0 0.0
    %1426 = vmatpush2.msra.mxu0 0.0
    %1427 = vmatprep.subr.mxu0 0.0
    %1428 = vmatpush2.msra.mxu0 0.0
    %1429 = vmatprep.subr.mxu0 0.0
    %1430 = vmatpush2.msra.mxu0 0.0
    %1431 = vmatprep.subr.mxu0 0.0
    %1432 = vmatpush2.msra.mxu0 0.0
    %1433 = vmatprep.subr.mxu0 0.0
    %1434 = vmatpush2.msra.mxu0 0.0
    %1435 = vmatprep.subr.mxu0 0.0
    %1436 = vmatpush2.msra.mxu0 0.0
    %1437 = vmatprep.subr.mxu0 0.0
    %1438 = vmatpush2.msra.mxu0 0.0
    %1439 = vmatprep.subr.mxu0 0.0
    %1440 = vmatpush2.msra.mxu0 0.0
    %1441 = vmatprep.subr.mxu0 0.0
    %1442 = vmatpush2.msra.mxu0 0.0
    %1443 = vmatprep.mubr.f32.mxu0 0.0
    %1444 = vmatmul.mubr.f32.gmra.mxu0 %v1304
    %v1445 = vpop.f32.mrf.mxu0
    %v1446 = vadd.f32 0.0, %v1445
    %v1447 = vpop.f32.mrf.mxu0
    %1448 = vdwg.mxu0
    %v1449 = vadd.f32 %v1307, %v1375
    %v1450 = vxor.u32 %v1449, 2147483648
    %v1451 = vmul.f32 %v1450, 1.442695
    %v1452 = vpow.pop %v1451
    %v1453 = vadd.f32 %v1452, 1.0
    %v1454 = vrcp.pop %v1453
    %v1455 = vmul.f32 1.0, %v1454
    %v1457 = vrot.slane %v1307, 1
    %v1459 = vadd.f32 %v1457, %v1377
    %v1460 = vxor.u32 %v1459, 2147483648
    %v1461 = vmul.f32 %v1460, 1.442695
    %v1462 = vpow.pop %v1461
    %v1463 = vadd.f32 %v1462, 1.0
    %v1464 = vrcp.pop %v1463
    %v1465 = vmul.f32 1.0, %v1464
    %v1466 = vadd.f32 %v1446, %v279
    %v1467 = vmul.f32 %v1455, %v1466
    %v1468 = vrot.slane %v1307, 2
    %v1470 = vadd.f32 %v1468, %v1467
    %v1471 = vtanh.pop %v1470
    %v1472 = vsub.f32 1.0, %v1465
    %v1473 = vmul.f32 %v1472, %v1471
    %v1474 = vmul.f32 %v1465, %v1304
    %v1475 = vadd.f32 %v1473, %v1474
    %1476 = vst [vmem:[#allocation3 + $0x6] sm:$0x1] %v1475
    %s1477 = scalar_lea.vmem [#allocation2], 7
    %v1478 = vld [vmem:[%s1477] ss:$8 sm:$0x7]
    %1479 = vmatprep.subr.mxu0 %v277
    %1480 = vmatpush1.msra.mxu0 %v276
    %1481 = vmatprep.subr.mxu0 %v274
    %1482 = vmatpush1.msra.mxu0 %v273
    %1483 = vmatprep.subr.mxu0 %v271
    %1484 = vmatpush1.msra.mxu0 %v270
    %1485 = vmatprep.subr.mxu0 %v268
    %1486 = vmatpush1.msra.mxu0 %v267
    %1487 = vmatprep.subr.mxu0 %v265
    %1488 = vmatpush1.msra.mxu0 %v264
    %1489 = vmatprep.subr.mxu0 %v262
    %1490 = vmatpush1.msra.mxu0 %v261
    %1491 = vmatprep.subr.mxu0 %v259
    %1492 = vmatpush1.msra.mxu0 %v258
    %1493 = vmatprep.subr.mxu0 %v256
    %1494 = vmatpush1.msra.mxu0 %v255
    %1495 = vmatprep.subr.mxu0 %v253
    %1496 = vmatpush1.msra.mxu0 %v252
    %1497 = vmatprep.subr.mxu0 %v250
    %1498 = vmatpush1.msra.mxu0 %v249
    %1499 = vmatprep.subr.mxu0 %v247
    %1500 = vmatpush1.msra.mxu0 %v246
    %1501 = vmatprep.subr.mxu0 %v244
    %1502 = vmatpush1.msra.mxu0 %v243
    %1503 = vmatprep.subr.mxu0 %v241
    %1504 = vmatpush1.msra.mxu0 %v240
    %1505 = vmatprep.subr.mxu0 %v238
    %1506 = vmatpush1.msra.mxu0 %v237
    %1507 = vmatprep.subr.mxu0 %v235
    %1508 = vmatpush1.msra.mxu0 %v234
    %1509 = vmatprep.subr.mxu0 %v232
    %1510 = vmatpush1.msra.mxu0 %v231
    %1511 = vmatprep.subr.mxu0 0.0
    %1512 = vmatpush2.msra.mxu0 0.0
    %1513 = vmatprep.subr.mxu0 0.0
    %1514 = vmatpush2.msra.mxu0 0.0
    %1515 = vmatprep.subr.mxu0 0.0
    %1516 = vmatpush2.msra.mxu0 0.0
    %1517 = vmatprep.subr.mxu0 0.0
    %1518 = vmatpush2.msra.mxu0 0.0
    %1519 = vmatprep.subr.mxu0 0.0
    %1520 = vmatpush2.msra.mxu0 0.0
    %1521 = vmatprep.subr.mxu0 0.0
    %1522 = vmatpush2.msra.mxu0 0.0
    %1523 = vmatprep.subr.mxu0 0.0
    %1524 = vmatpush2.msra.mxu0 0.0
    %1525 = vmatprep.subr.mxu0 0.0
    %1526 = vmatpush2.msra.mxu0 0.0
    %1527 = vmatprep.subr.mxu0 0.0
    %1528 = vmatpush2.msra.mxu0 0.0
    %1529 = vmatprep.subr.mxu0 0.0
    %1530 = vmatpush2.msra.mxu0 0.0
    %1531 = vmatprep.subr.mxu0 0.0
    %1532 = vmatpush2.msra.mxu0 0.0
    %1533 = vmatprep.subr.mxu0 0.0
    %1534 = vmatpush2.msra.mxu0 0.0
    %1535 = vmatprep.subr.mxu0 0.0
    %1536 = vmatpush2.msra.mxu0 0.0
    %1537 = vmatprep.subr.mxu0 0.0
    %1538 = vmatpush2.msra.mxu0 0.0
    %1539 = vmatprep.subr.mxu0 0.0
    %1540 = vmatpush2.msra.mxu0 0.0
    %1541 = vmatprep.subr.mxu0 0.0
    %1542 = vmatpush2.msra.mxu0 0.0
    %1543 = vmatprep.mubr.f32.mxu0 0.0
    %1544 = vmatmul.mubr.f32.gmra.mxu0 %v1475
    %v1545 = vpop.f32.mrf.mxu0
    %v1546 = vadd.f32 0.0, %v1545
    %v1547 = vpop.f32.mrf.mxu0
    %v1548 = vadd.f32 0.0, %v1547
    %1549 = vdwg.mxu0
    %1550 = vmatprep.subr.mxu0 0.0
    %1551 = vmatpush1.msra.mxu0 %v278
    %1552 = vmatprep.subr.mxu0 0.0
    %1553 = vmatpush1.msra.mxu0 %v275
    %1554 = vmatprep.subr.mxu0 0.0
    %1555 = vmatpush1.msra.mxu0 %v272
    %1556 = vmatprep.subr.mxu0 0.0
    %1557 = vmatpush1.msra.mxu0 %v269
    %1558 = vmatprep.subr.mxu0 0.0
    %1559 = vmatpush1.msra.mxu0 %v266
    %1560 = vmatprep.subr.mxu0 0.0
    %1561 = vmatpush1.msra.mxu0 %v263
    %1562 = vmatprep.subr.mxu0 0.0
    %1563 = vmatpush1.msra.mxu0 %v260
    %1564 = vmatprep.subr.mxu0 0.0
    %1565 = vmatpush1.msra.mxu0 %v257
    %1566 = vmatprep.subr.mxu0 0.0
    %1567 = vmatpush1.msra.mxu0 %v254
    %1568 = vmatprep.subr.mxu0 0.0
    %1569 = vmatpush1.msra.mxu0 %v251
    %1570 = vmatprep.subr.mxu0 0.0
    %1571 = vmatpush1.msra.mxu0 %v248
    %1572 = vmatprep.subr.mxu0 0.0
    %1573 = vmatpush1.msra.mxu0 %v245
    %1574 = vmatprep.subr.mxu0 0.0
    %1575 = vmatpush1.msra.mxu0 %v242
    %1576 = vmatprep.subr.mxu0 0.0
    %1577 = vmatpush1.msra.mxu0 %v239
    %1578 = vmatprep.subr.mxu0 0.0
    %1579 = vmatpush1.msra.mxu0 %v236
    %1580 = vmatprep.subr.mxu0 0.0
    %1581 = vmatpush1.msra.mxu0 %v233
    %1582 = vmatprep.subr.mxu0 0.0
    %1583 = vmatpush2.msra.mxu0 0.0
    %1584 = vmatprep.subr.mxu0 0.0
    %1585 = vmatpush2.msra.mxu0 0.0
    %1586 = vmatprep.subr.mxu0 0.0
    %1587 = vmatpush2.msra.mxu0 0.0
    %1588 = vmatprep.subr.mxu0 0.0
    %1589 = vmatpush2.msra.mxu0 0.0
    %1590 = vmatprep.subr.mxu0 0.0
    %1591 = vmatpush2.msra.mxu0 0.0
    %1592 = vmatprep.subr.mxu0 0.0
    %1593 = vmatpush2.msra.mxu0 0.0
    %1594 = vmatprep.subr.mxu0 0.0
    %1595 = vmatpush2.msra.mxu0 0.0
    %1596 = vmatprep.subr.mxu0 0.0
    %1597 = vmatpush2.msra.mxu0 0.0
    %1598 = vmatprep.subr.mxu0 0.0
    %1599 = vmatpush2.msra.mxu0 0.0
    %1600 = vmatprep.subr.mxu0 0.0
    %1601 = vmatpush2.msra.mxu0 0.0
    %1602 = vmatprep.subr.mxu0 0.0
    %1603 = vmatpush2.msra.mxu0 0.0
    %1604 = vmatprep.subr.mxu0 0.0
    %1605 = vmatpush2.msra.mxu0 0.0
    %1606 = vmatprep.subr.mxu0 0.0
    %1607 = vmatpush2.msra.mxu0 0.0
    %1608 = vmatprep.subr.mxu0 0.0
    %1609 = vmatpush2.msra.mxu0 0.0
    %1610 = vmatprep.subr.mxu0 0.0
    %1611 = vmatpush2.msra.mxu0 0.0
    %1612 = vmatprep.subr.mxu0 0.0
    %1613 = vmatpush2.msra.mxu0 0.0
    %1614 = vmatprep.mubr.f32.mxu0 0.0
    %1615 = vmatmul.mubr.f32.gmra.mxu0 %v1475
    %v1616 = vpop.f32.mrf.mxu0
    %v1617 = vadd.f32 0.0, %v1616
    %v1618 = vpop.f32.mrf.mxu0
    %1619 = vdwg.mxu0
    %v1620 = vadd.f32 %v1478, %v1546
    %v1621 = vxor.u32 %v1620, 2147483648
    %v1622 = vmul.f32 %v1621, 1.442695
    %v1623 = vpow.pop %v1622
    %v1624 = vadd.f32 %v1623, 1.0
    %v1625 = vrcp.pop %v1624
    %v1626 = vmul.f32 1.0, %v1625
    %v1628 = vrot.slane %v1478, 1
    %v1630 = vadd.f32 %v1628, %v1548
    %v1631 = vxor.u32 %v1630, 2147483648
    %v1632 = vmul.f32 %v1631, 1.442695
    %v1633 = vpow.pop %v1632
    %v1634 = vadd.f32 %v1633, 1.0
    %v1635 = vrcp.pop %v1634
    %v1636 = vmul.f32 1.0, %v1635
    %v1637 = vadd.f32 %v1617, %v279
    %v1638 = vmul.f32 %v1626, %v1637
    %v1639 = vrot.slane %v1478, 2
    %v1641 = vadd.f32 %v1639, %v1638
    %v1642 = vtanh.pop %v1641
    %v1643 = vsub.f32 1.0, %v1636
    %v1644 = vmul.f32 %v1643, %v1642
    %v1645 = vmul.f32 %v1636, %v1475
    %v1646 = vadd.f32 %v1644, %v1645
    %1647 = vst [vmem:[#allocation3 + $0x7] sm:$0x1] %v1646
    %v1648 = vld [vmem:[%s4 + $0x1] sm:$0x1]
    %v1649 = vld [vmem:[%s4 + $0x2] sm:$0x1]
    %v1650 = vld [vmem:[#allocation3] sm:$0xff]
    %v1651 = vlaneseq
    %v1652 = vshrl.u32 %v1651, 7
    %v1653 = vsub.s32 0, %v1652
    %v1654 = vrot.slane %v1649, %v1653
    %v1655 = vmul.f32 %v1650, %v1654
    %v1656 = vlaneseq
    %v1657 = vshrl.u32 %v1656, 7
    %v1658 = vsub.s32 0, %v1657
    %v1659 = vrot.slane %v1648, %v1658
    %v1660 = vadd.f32 %v1655, %v1659
    %1661 = vst [vmem:[#allocation10] sm:$0xff] %v1660
    %1662 = vst [vmem:[#allocation11] sm:$0x1] %v1646
    // Predicated region
    $region34: #{tpu_custom_call.1} parent=1 // pred_check
      _
    $region35: #{tpu_custom_call.1} parent=1 // pred_check_branch
      %1664 = sbr.rel (0) target = $region37
    $region36: #{tpu_custom_call.1} parent=1 // pred_region
      %s1666 = ssub.s32 128, 128
      %1667 = vsyncadd [#allocation6], %s1666
      %s1669 = sshll.u32 [#allocation10], 4
      %s1670 = int_to_ptr.vmem [resolvable:$true] %s1669
      %1672 = dma.vmem_to_hbm [thread:$0]  %s1670, 128, %s5, [#allocation6]
    $region37: #{tpu_custom_call.1} parent=1 // pred_fallthru
      _
    // Predicated region
    $region38: #{tpu_custom_call.1} parent=1 // pred_check
      _
    $region39: #{tpu_custom_call.1} parent=1 // pred_check_branch
      %1674 = sbr.rel (0) target = $region41
    $region40: #{tpu_custom_call.1} parent=1 // pred_region
      %s1676 = ssub.s32 16, 16
      %1677 = vsyncadd [#allocation12], %s1676
      %s1679 = sshll.u32 [#allocation11], 4
      %s1680 = int_to_ptr.vmem [resolvable:$true] %s1679
      %1682 = dma.vmem_to_hbm [thread:$0]  %s1680, 16, %s6, [#allocation12]
    $region41: #{tpu_custom_call.1} parent=1 // pred_fallthru
      _
    // Predicated region
    $region42: #{tpu_custom_call.1} parent=1 // pred_check
      _
    $region43: #{tpu_custom_call.1} parent=1 // pred_check_branch
      %1684 = sbr.rel (0) target = $region45
    $region44: #{tpu_custom_call.1} parent=1 // pred_region
      %1685 = dma.done [#allocation6], 128
    $region45: #{tpu_custom_call.1} parent=1 // pred_fallthru
      _
    // Predicated region
    $region46: #{tpu_custom_call.1} parent=1 // pred_check
      _
    $region47: #{tpu_custom_call.1} parent=1 // pred_check_branch
      %1687 = sbr.rel (0) target = $region49
    $region48: #{tpu_custom_call.1} parent=1 // pred_region
      %1688 = dma.done [#allocation12], 16
    $region49: #{tpu_custom_call.1} parent=1 // pred_fallthru
      _
    %1689 = vsyncpa [#allocation5], 1
    %1690 = vsyncpa [#allocation8], 1
    %1691 = vsyncpa [#allocation6], 1
    %1692 = vsyncpa [#allocation12], 1

</llo_original>
